<compile_context>
chip_gen: v5e
topology: v5e:2x2
jax: 0.10.0
libtpu: 0.0.40
codegen_flags: <defaults>
</compile_context>

<pallas_src>
import jax
import jax.numpy as jnp
from jax.experimental import pallas as pl
from jax.experimental.pallas import tpu as pltpu


def _round_up(x, m):
    return ((x + m - 1) // m) * m


def _attention_kernel(x_ref, wt_ref, cand_ref, cnt_ref, o_ref):
    # x_ref:    (tn, Din)        flattened char embeddings
    # wt_ref:   (Din, Dout)      linear_W weight, pre-transposed in the wrapper
    # cand_ref: (tn, C, Dout)    candidate word vectors (packed, zero padded)
    # cnt_ref:  (tn, 1, 1) int32 number of valid candidates (0 past seq_len)
    # o_ref:    (tn, Dout)       attention context output
    tn, C, Dout = cand_ref.shape

    x = x_ref[...]
    wt = wt_ref[...]
    cand = cand_ref[...]
    cnt = cnt_ref[...]                                           # (tn, 1, 1)

    # 'general' attention projection: one MXU matmul with M = tn rows.
    # (If inputs are bf16 in production, feed them directly; the f32 accumulate
    # comes from preferred_element_type.)
    lin = jnp.dot(x, wt, preferred_element_type=jnp.float32)     # (tn, Dout)
    lin3 = lin[:, None, :]                                       # (tn, 1, Dout)

    # scores[n, c] = cand[n, c, :] . lin[n, :]  -- batched MXU contraction.
    scores = jnp.einsum('nqd,ncd->nqc', lin3, cand,
                        preferred_element_type=jnp.float32)      # (tn, 1, C)

    # Valid-candidate mask rebuilt from per-row counts (no dense mask stream).
    cidx = jax.lax.broadcasted_iota(jnp.int32, (tn, 1, C), 2)
    valid = cidx < cnt                                           # (tn, 1, C)
    has_any = cnt > 0                                            # (tn, 1, 1)

    # Masked softmax over the candidate axis (f32 throughout).
    masked = jnp.where(valid, scores, jnp.float32(-1e30))
    m = jnp.max(masked, axis=-1, keepdims=True)                  # (tn, 1, 1)
    m = jnp.where(has_any, m, jnp.float32(0.0))
    e = jnp.where(valid, jnp.exp(masked - m), jnp.float32(0.0))
    denom = jnp.maximum(jnp.sum(e, axis=-1, keepdims=True), jnp.float32(1e-30))
    p = e / denom                                                # (tn, 1, C)

    # context[n, :] = p[n, :] @ cand[n, :, :] -- batched MXU contraction.
    ctx = jnp.einsum('nqc,ncd->nqd', p.astype(cand.dtype), cand,
                     preferred_element_type=jnp.float32)         # (tn, 1, Dout)

    # Rows with no candidates (or past seq_len) have p == 0, so the context is
    # exactly zero, matching the torch zero-padding behaviour.
    o_ref[...] = ctx[:, 0, :].astype(o_ref.dtype)


def _vmem_limit_bytes():
    # Explicit scoped-VMEM cap: above the 16/32 MiB defaults so larger row
    # tiles can be used, but well under physical VMEM (64 MiB v7x, 128 MiB
    # v5e/v6e).  Falls back conservatively if the query is unavailable.
    try:
        return min(pltpu.get_tpu_info().vmem_capacity_bytes // 2, 64 * 1024 * 1024)
    except Exception:
        return 32 * 1024 * 1024


def attention_forward(input_context, W, cand_vecs, cand_counts, *, block_rows=128):
    """Pallas forward of Attention (attention_type='general').

    input_context: (B, L, Din)       char hidden embeddings
    W:             (Dout, Din)       linear_W.weight (torch nn.Linear layout)
    cand_vecs:     (B, L, C, Dout)   candidate word vectors, packed front-first
    cand_counts:   (B, L) int        #valid candidates per char (0 past seq_len)
    returns:       (B, L, Dout) float32
    """
    B, L, Din = input_context.shape
    _, _, C, Dout = cand_vecs.shape
    N = B * L

    # Row tile: biggest multiple-of-8 tile <= block_rows; pad N up to a multiple.
    tn = min(block_rows, _round_up(N, 8))
    n_pad = _round_up(N, tn)

    x = input_context.reshape(N, Din)
    cand = cand_vecs.reshape(N, C, Dout)
    cnt = cand_counts.reshape(N, 1, 1).astype(jnp.int32)
    if n_pad != N:
        pad = n_pad - N
        x = jnp.pad(x, ((0, pad), (0, 0)))
        cand = jnp.pad(cand, ((0, pad), (0, 0), (0, 0)))
        cnt = jnp.pad(cnt, ((0, pad), (0, 0), (0, 0)))   # count 0 -> zero rows

    # Pre-transpose the weight once outside the kernel (no per-step XLU w.T).
    wt = W.T                                             # (Din, Dout)

    out = pl.pallas_call(
        _attention_kernel,
        out_shape=jax.ShapeDtypeStruct((n_pad, Dout), jnp.float32),
        grid_spec=pltpu.PrefetchScalarGridSpec(
            num_scalar_prefetch=0,
            grid=(n_pad // tn,),
            in_specs=[
                pl.BlockSpec((tn, Din), lambda i: (i, 0)),
                pl.BlockSpec((Din, Dout), lambda i: (0, 0)),
                pl.BlockSpec((tn, C, Dout), lambda i: (i, 0, 0)),
                pl.BlockSpec((tn, 1, 1), lambda i: (i, 0, 0)),
            ],
            out_specs=pl.BlockSpec((tn, Dout), lambda i: (i, 0)),
        ),
        compiler_params=pltpu.CompilerParams(
            dimension_semantics=("parallel",),
            vmem_limit_bytes=_vmem_limit_bytes(),
        ),
    )(x, wt, cand, cnt)

    return out[:N].reshape(B, L, Dout)


def attention_reference(input_context, W, cand_vecs, cand_counts):
    """Pure-JAX reference replicating the PyTorch semantics."""
    C = cand_vecs.shape[2]
    lin = jnp.einsum('bld,od->blo', input_context, W)
    scores = jnp.einsum('blco,blo->blc', cand_vecs, lin)
    valid = jnp.arange(C)[None, None, :] < cand_counts[..., None]
    masked = jnp.where(valid, scores, -1e30)
    m = jnp.max(masked, axis=-1, keepdims=True)
    m = jnp.where(cand_counts[..., None] > 0, m, 0.0)
    e = jnp.where(valid, jnp.exp(masked - m), 0.0)
    p = e / jnp.maximum(jnp.sum(e, axis=-1, keepdims=True), 1e-30)
    return jnp.einsum('blc,blco->blo', p, cand_vecs)


if __name__ == "__main__":
    # Small shapes consistent with the module: batch=2, max_len=8 characters,
    # char-hidden input_size=128, output_size=128 (module default is 200; a
    # lane-width multiple keeps every block lane dense -- pad 200 -> 256 in
    # production), up to C=8 candidate words per character (window_size=4 ->
    # at most 9 covering words; capped at 8 for a clean sublane tile).
    B, L, C = 2, 8, 8
    Din, Dout = 128, 128

    key = jax.random.PRNGKey(0)
    k1, k2, k3, k4 = jax.random.split(key, 4)

    input_context = jax.random.normal(k1, (B, L, Din), dtype=jnp.float32)
    # linear_W: nn.Linear(input_size, output_size, bias=False) -> weight (Dout, Din)
    W = jax.random.normal(k2, (Dout, Din), dtype=jnp.float32) * 0.02

    # Host-side candidate bookkeeping (stands in for match_all_candidate_words):
    # number of candidate words covering each char, zero past the sentence end.
    counts = jax.random.randint(k3, (B, L), 0, C + 1)
    seq_len = jnp.array([L, 5], dtype=jnp.int32)           # 2nd sentence shorter
    in_seq = jnp.arange(L)[None, :] < seq_len[:, None]
    counts = jnp.where(in_seq, counts, 0).astype(jnp.int32)

    cand_vecs = jax.random.normal(k4, (B, L, C, Dout), dtype=jnp.float32)
    cand_mask = (jnp.arange(C)[None, None, :] < counts[..., None]).astype(jnp.float32)
    cand_vecs = cand_vecs * cand_mask[..., None]           # packed, zero padded

    out = attention_forward(input_context, W, cand_vecs, counts)
    out = jax.block_until_ready(out)
    ref = attention_reference(input_context, W, cand_vecs, counts)
    assert out.shape == (B, L, Dout)
    # Tolerance allows for MXU vs XLA f32 matmul pass-count differences.
    assert jnp.allclose(out, ref, rtol=2e-2, atol=2e-2), "mismatch vs reference"

    # Also exercise the multi-step row-tiled grid path.
    out2 = jax.block_until_ready(
        attention_forward(input_context, W, cand_vecs, counts, block_rows=8))
    assert jnp.allclose(out2, ref, rtol=2e-2, atol=2e-2), "tiled mismatch vs reference"

    print("KERNEL_OK")
</pallas_src>

<mosaic_0001>
module attributes {stable_mosaic.version = 11 : i64} {
  func.func @_attention_kernel(%arg0: i32, %arg1: memref<16x128xf32, #tpu.memory_space<vmem>>, %arg2: memref<128x128xf32, #tpu.memory_space<vmem>>, %arg3: memref<16x8x128xf32, #tpu.memory_space<vmem>>, %arg4: memref<16x1x1xi32, #tpu.memory_space<vmem>>, %arg5: memref<16x128xf32, #tpu.memory_space<vmem>>) attributes {dimension_semantics = [#tpu.dimension_semantics<parallel>], iteration_bounds = array<i64: 1>, scalar_prefetch = 0 : i64, scratch_operands = 0 : i64, tpu.core_type = #tpu.core_type<tc>, window_params = [{transform_indices = @transform_0, window_bounds = array<i64: 16, 128>}, {pipeline_mode = #tpu.pipeline_mode<synchronous>, transform_indices = @transform_1, window_bounds = array<i64: 128, 128>}, {transform_indices = @transform_2, window_bounds = array<i64: 16, 8, 128>}, {transform_indices = @transform_3, window_bounds = array<i64: 16, 1, 1>}, {transform_indices = @transform_4, window_bounds = array<i64: 16, 128>}]} {
    %c0 = arith.constant 0 : index
    %c0_0 = arith.constant 0 : index
    %0 = vector.load %arg1[%c0, %c0_0] : memref<16x128xf32, #tpu.memory_space<vmem>>, vector<16x128xf32>
    %c0_1 = arith.constant 0 : index
    %c0_2 = arith.constant 0 : index
    %1 = vector.load %arg2[%c0_1, %c0_2] : memref<128x128xf32, #tpu.memory_space<vmem>>, vector<128x128xf32>
    %c0_3 = arith.constant 0 : index
    %c0_4 = arith.constant 0 : index
    %c0_5 = arith.constant 0 : index
    %2 = vector.load %arg3[%c0_3, %c0_4, %c0_5] : memref<16x8x128xf32, #tpu.memory_space<vmem>>, vector<16x8x128xf32>
    %c0_6 = arith.constant 0 : index
    %c0_7 = arith.constant 0 : index
    %c0_8 = arith.constant 0 : index
    %3 = vector.load %arg4[%c0_6, %c0_7, %c0_8] : memref<16x1x1xi32, #tpu.memory_space<vmem>>, vector<16x1x1xi32>
    %cst = arith.constant dense<0.000000e+00> : vector<16x128xf32>
    %4 = tpu.matmul %0, %1, %cst {dimension_numbers = #tpu.dot_dimension_numbers<[1], [0], [0], [1], [0, 0, 1, 1], [], []>} : vector<16x128xf32>, vector<128x128xf32>, vector<16x128xf32> -> vector<16x128xf32>
    %5 = vector.shape_cast %4 : vector<16x128xf32> to vector<16x1x128xf32>
    "tpu.trace_start"() <{level = 10 : i32, message = "nqd,ncd->nqc"}> : () -> ()
    %cst_9 = arith.constant dense<0.000000e+00> : vector<16x1x8xf32>
    %6 = tpu.matmul %5, %2, %cst_9 {dimension_numbers = #tpu.dot_dimension_numbers<[2], [2], [1], [1], [0, 0, 0, 1, 1, 1], [0], [0]>} : vector<16x1x128xf32>, vector<16x8x128xf32>, vector<16x1x8xf32> -> vector<16x1x8xf32>
    "tpu.trace_stop"() : () -> ()
    %7 = tpu.iota {dimensions = array<i32: 2>} : vector<16x1x8xi32>
    %8 = vector.broadcast %3 : vector<16x1x1xi32> to vector<16x1x8xi32>
    %9 = arith.cmpi slt, %7, %8 : vector<16x1x8xi32>
    %c0_i32 = arith.constant 0 : i32
    %10 = vector.broadcast %c0_i32 : i32 to vector<16x1x1xi32>
    %11 = arith.cmpi sgt, %3, %10 : vector<16x1x1xi32>
    %cst_10 = arith.constant -1.000000e+30 : f32
    %12 = vector.broadcast %cst_10 : f32 to vector<16x1x8xf32>
    %13 = arith.select %9, %6, %12 : vector<16x1x8xi1>, vector<16x1x8xf32>
    %cst_11 = arith.constant dense<0xFF800000> : vector<16x1xf32>
    %14 = vector.multi_reduction <maximumf>, %13, %cst_11 [2] : vector<16x1x8xf32> to vector<16x1xf32>
    %15 = vector.shape_cast %14 : vector<16x1xf32> to vector<16x1x1xf32>
    %cst_12 = arith.constant 0.000000e+00 : f32
    %16 = vector.broadcast %cst_12 : f32 to vector<16x1x1xf32>
    %17 = arith.select %11, %15, %16 : vector<16x1x1xi1>, vector<16x1x1xf32>
    %18 = vector.broadcast %17 : vector<16x1x1xf32> to vector<16x1x8xf32>
    %19 = arith.subf %13, %18 : vector<16x1x8xf32>
    %20 = math.exp %19 : vector<16x1x8xf32>
    %cst_13 = arith.constant 0.000000e+00 : f32
    %21 = vector.broadcast %cst_13 : f32 to vector<16x1x8xf32>
    %22 = arith.select %9, %20, %21 : vector<16x1x8xi1>, vector<16x1x8xf32>
    %cst_14 = arith.constant dense<0.000000e+00> : vector<16x1xf32>
    %23 = vector.multi_reduction <add>, %22, %cst_14 [2] : vector<16x1x8xf32> to vector<16x1xf32>
    %24 = vector.shape_cast %23 : vector<16x1xf32> to vector<16x1x1xf32>
    %cst_15 = arith.constant 1.000000e-30 : f32
    %25 = vector.broadcast %cst_15 : f32 to vector<16x1x1xf32>
    %26 = arith.maximumf %24, %25 : vector<16x1x1xf32>
    %27 = vector.broadcast %26 : vector<16x1x1xf32> to vector<16x1x8xf32>
    %28 = arith.divf %22, %27 : vector<16x1x8xf32>
    "tpu.trace_start"() <{level = 10 : i32, message = "nqc,ncd->nqd"}> : () -> ()
    %cst_16 = arith.constant dense<0.000000e+00> : vector<16x1x128xf32>
    %29 = tpu.matmul %28, %2, %cst_16 {dimension_numbers = #tpu.dot_dimension_numbers<[2], [1], [1], [2], [0, 0, 0, 1, 1, 2], [0], [0]>} : vector<16x1x8xf32>, vector<16x8x128xf32>, vector<16x1x128xf32> -> vector<16x1x128xf32>
    "tpu.trace_stop"() : () -> ()
    %30 = vector.shape_cast %29 : vector<16x1x128xf32> to vector<16x128xf32>
    %c0_17 = arith.constant 0 : index
    %c0_18 = arith.constant 0 : index
    %31 = vector.load %arg5[%c0_17, %c0_18] : memref<16x128xf32, #tpu.memory_space<vmem>>, vector<16x128xf32>
    tpu.vector_store %arg5[%c0_17, %c0_18], %30 {strides = array<i32>} : memref<16x128xf32, #tpu.memory_space<vmem>>, vector<16x128xf32>,
    return
  }
  func.func @transform_0(%arg0: i32) -> (i32, i32) {
    %c0_i32 = arith.constant 0 : i32
    %c0_i32_0 = arith.constant 0 : i32
    return %arg0, %c0_i32 : i32, i32
  }
  func.func @transform_1(%arg0: i32) -> (i32, i32) {
    %c0_i32 = arith.constant 0 : i32
    %c0_i32_0 = arith.constant 0 : i32
    %c0_i32_1 = arith.constant 0 : i32
    return %c0_i32, %c0_i32_0 : i32, i32
  }
  func.func @transform_2(%arg0: i32) -> (i32, i32, i32) {
    %c0_i32 = arith.constant 0 : i32
    %c0_i32_0 = arith.constant 0 : i32
    %c0_i32_1 = arith.constant 0 : i32
    return %arg0, %c0_i32, %c0_i32_0 : i32, i32, i32
  }
  func.func @transform_3(%arg0: i32) -> (i32, i32, i32) {
    %c0_i32 = arith.constant 0 : i32
    %c0_i32_0 = arith.constant 0 : i32
    %c0_i32_1 = arith.constant 0 : i32
    return %arg0, %c0_i32, %c0_i32_0 : i32, i32, i32
  }
  func.func @transform_4(%arg0: i32) -> (i32, i32) {
    %c0_i32 = arith.constant 0 : i32
    %c0_i32_0 = arith.constant 0 : i32
    return %arg0, %c0_i32 : i32, i32
  }
}

</mosaic_0001>

<llo_original>
// kernel: tpu_custom_call.1
$region0: #{tpu_custom_call.1}
  #allocation0 [shape = 'u32[]', space=smem, size = 0x4, offset = 0x4, fixed_abs, tag = 'smem constant byte address 0x4 - core index']
  #allocation1 [shape = 'u32[72,128]{1,0:T(1,128)}', space=vmem, size = 0x9000, scoped, tag = 'internal scratch']
  %s0 = inlined_call_operand.vmem [shape: f32[16,128], index: 0, kind: input, shape index: {}]
  %s1 = inlined_call_operand.hbm [shape: f32[128,128], index: 1, kind: input, shape index: {}]
  %s2 = inlined_call_operand.hbm [shape: f32[16,8,128], index: 2, kind: input, shape index: {}]
  %s3 = inlined_call_operand.vmem [shape: s32[16,1,1], index: 3, kind: input, shape index: {}]
  %s4 = inlined_call_operand.hbm [shape: f32[16,128], index: 4, kind: output, shape index: {}]
  %s5 = sld [smem:[#allocation0]]
  $region34: #{tpu_custom_call.1} parent=0
    _
  %s7 = ssub.s32 1, %s5
  %s8 = scalar_select 0, %s7, %s5
  $region1: #{tpu_custom_call.1} parent=0
    #allocation2 [shape = 'u8[65536]{0}', space=vmem, size = 0x10000, scoped, tag = 'input window, operand 1, single buffered']
    #allocation3 [shape = 's32[1]{0}', space=sflag, size = 0x4, scoped, tag = 'scoped memory for tpu_custom_call.1']
    #allocation4 [shape = 's32[1]{0}', space=sflag, size = 0x4, scoped, tag = 'scoped memory for tpu_custom_call.1']
    #allocation5 [shape = 'u8[65536]{0}', space=vmem, size = 0x10000, scoped, tag = 'input window, operand 2, single buffered']
    #allocation6 [shape = 's32[1]{0}', space=sflag, size = 0x4, scoped, tag = 'scoped memory for tpu_custom_call.1']
    #allocation7 [shape = 'u8[8192]{0}', space=vmem, size = 0x2000, scoped, tag = 'output window, operand 0, single buffered']
    %9 = vsyncpa [#allocation3], 0
    %10 = vsyncpa [#allocation6], 0
    %11 = vsyncpa [#allocation4], 0
    // Predicated region
    $region2: #{tpu_custom_call.1} parent=1 // pred_check
      _
    $region3: #{tpu_custom_call.1} parent=1 // pred_check_branch
      %13 = sbr.rel (0) target = $region5
    $region4: #{tpu_custom_call.1} parent=1 // pred_region
      _
    $region5: #{tpu_custom_call.1} parent=1 // pred_fallthru
      _
    // Predicated region
    $region6: #{tpu_custom_call.1} parent=1 // pred_check
      _
    $region7: #{tpu_custom_call.1} parent=1 // pred_check_branch
      %15 = sbr.rel (0) target = $region9
    $region8: #{tpu_custom_call.1} parent=1 // pred_region
      %17 = vsyncadd [#allocation3], 0
      %s18 = sshll.u32 %s1, 4
      %s19 = int_to_ptr.hbm [resolvable:$true] %s18
      %s20 = sshll.u32 [#allocation2], 4
      %s21 = int_to_ptr.vmem [resolvable:$true] %s20
      %26 = dma.hbm_to_vmem [thread:$0]  %s19, 2048, %s21, [#allocation3], 128, 128, 8
    $region9: #{tpu_custom_call.1} parent=1 // pred_fallthru
      _
    // Predicated region
    $region10: #{tpu_custom_call.1} parent=1 // pred_check
      _
    $region11: #{tpu_custom_call.1} parent=1 // pred_check_branch
      %28 = sbr.rel (0) target = $region13
    $region12: #{tpu_custom_call.1} parent=1 // pred_region
      %30 = vsyncadd [#allocation6], 0
      %s31 = sshll.u32 %s2, 4
      %s32 = int_to_ptr.hbm [resolvable:$true] %s31
      %s33 = sshll.u32 [#allocation5], 4
      %s34 = int_to_ptr.vmem [resolvable:$true] %s33
      %39 = dma.hbm_to_vmem [thread:$0]  %s32, 2048, %s34, [#allocation6], 128, 128, 8
    $region13: #{tpu_custom_call.1} parent=1 // pred_fallthru
      _
    // Predicated region
    $region14: #{tpu_custom_call.1} parent=1 // pred_check
      _
    $region15: #{tpu_custom_call.1} parent=1 // pred_check_branch
      %41 = sbr.rel (0) target = $region17
    $region16: #{tpu_custom_call.1} parent=1 // pred_region
      _
    $region17: #{tpu_custom_call.1} parent=1 // pred_fallthru
      _
    // Predicated region
    $region18: #{tpu_custom_call.1} parent=1 // pred_check
      _
    $region19: #{tpu_custom_call.1} parent=1 // pred_check_branch
      %43 = sbr.rel (0) target = $region21
    $region20: #{tpu_custom_call.1} parent=1 // pred_region
      %45 = dma.done [#allocation3], 2048
    $region21: #{tpu_custom_call.1} parent=1 // pred_fallthru
      _
    // Predicated region
    $region22: #{tpu_custom_call.1} parent=1 // pred_check
      _
    $region23: #{tpu_custom_call.1} parent=1 // pred_check_branch
      %47 = sbr.rel (0) target = $region25
    $region24: #{tpu_custom_call.1} parent=1 // pred_region
      %49 = dma.done [#allocation6], 2048
    $region25: #{tpu_custom_call.1} parent=1 // pred_fallthru
      _
    %v50 = vld [vmem:[%s0] sm:$0xff]
    %v51 = vld [vmem:[%s0 + $0x8] sm:$0xff]
    %v52 = vld [vmem:[#allocation2] sm:$0xff]
    %v53 = vld [vmem:[#allocation2 + $0x8] sm:$0xff]
    %v54 = vld [vmem:[#allocation2 + $0x10] sm:$0xff]
    %v55 = vld [vmem:[#allocation2 + $0x18] sm:$0xff]
    %v56 = vld [vmem:[#allocation2 + $0x20] sm:$0xff]
    %v57 = vld [vmem:[#allocation2 + $0x28] sm:$0xff]
    %v58 = vld [vmem:[#allocation2 + $0x30] sm:$0xff]
    %v59 = vld [vmem:[#allocation2 + $0x38] sm:$0xff]
    %v60 = vld [vmem:[#allocation2 + $0x40] sm:$0xff]
    %v61 = vld [vmem:[#allocation2 + $0x48] sm:$0xff]
    %v62 = vld [vmem:[#allocation2 + $0x50] sm:$0xff]
    %v63 = vld [vmem:[#allocation2 + $0x58] sm:$0xff]
    %v64 = vld [vmem:[#allocation2 + $0x60] sm:$0xff]
    %v65 = vld [vmem:[#allocation2 + $0x68] sm:$0xff]
    %v66 = vld [vmem:[#allocation2 + $0x70] sm:$0xff]
    %v67 = vld [vmem:[#allocation2 + $0x78] sm:$0xff]
    %v68 = vld [vmem:[#allocation5] sm:$0xff]
    %v69 = vld [vmem:[#allocation5 + $0x8] sm:$0xff]
    %v70 = vld [vmem:[#allocation5 + $0x10] sm:$0xff]
    %v71 = vld [vmem:[#allocation5 + $0x18] sm:$0xff]
    %v72 = vld [vmem:[#allocation5 + $0x20] sm:$0xff]
    %v73 = vld [vmem:[#allocation5 + $0x28] sm:$0xff]
    %v74 = vld [vmem:[#allocation5 + $0x30] sm:$0xff]
    %v75 = vld [vmem:[#allocation5 + $0x38] sm:$0xff]
    %v76 = vld [vmem:[#allocation5 + $0x40] sm:$0xff]
    %v77 = vld [vmem:[#allocation5 + $0x48] sm:$0xff]
    %v78 = vld [vmem:[#allocation5 + $0x50] sm:$0xff]
    %v79 = vld [vmem:[#allocation5 + $0x58] sm:$0xff]
    %v80 = vld [vmem:[#allocation5 + $0x60] sm:$0xff]
    %v81 = vld [vmem:[#allocation5 + $0x68] sm:$0xff]
    %v82 = vld [vmem:[#allocation5 + $0x70] sm:$0xff]
    %v83 = vld [vmem:[#allocation5 + $0x78] sm:$0xff]
    %v84 = vld [vmem:[%s3] sm:$0x1]
    %v85 = vld [vmem:[%s3 + $0x1] sm:$0x1]
    %v86 = vld [vmem:[%s3 + $0x2] sm:$0x1]
    %v87 = vld [vmem:[%s3 + $0x3] sm:$0x1]
    %v88 = vld [vmem:[%s3 + $0x4] sm:$0x1]
    %v89 = vld [vmem:[%s3 + $0x5] sm:$0x1]
    %v90 = vld [vmem:[%s3 + $0x6] sm:$0x1]
    %v91 = vld [vmem:[%s3 + $0x7] sm:$0x1]
    %v92 = vld [vmem:[%s3 + $0x8] sm:$0x1]
    %v93 = vld [vmem:[%s3 + $0x9] sm:$0x1]
    %v94 = vld [vmem:[%s3 + $0xa] sm:$0x1]
    %v95 = vld [vmem:[%s3 + $0xb] sm:$0x1]
    %v96 = vld [vmem:[%s3 + $0xc] sm:$0x1]
    %v97 = vld [vmem:[%s3 + $0xd] sm:$0x1]
    %v98 = vld [vmem:[%s3 + $0xe] sm:$0x1]
    %v99 = vld [vmem:[%s3 + $0xf] sm:$0x1]
    %100 = vmatpush.msra.mxu0 %v67
    %101 = vmatpush.msra.mxu0 %v66
    %102 = vmatpush.msra.mxu0 %v65
    %103 = vmatpush.msra.mxu0 %v64
    %104 = vmatpush.msra.mxu0 %v63
    %105 = vmatpush.msra.mxu0 %v62
    %106 = vmatpush.msra.mxu0 %v61
    %107 = vmatpush.msra.mxu0 %v60
    %108 = vmatpush.msra.mxu0 %v59
    %109 = vmatpush.msra.mxu0 %v58
    %110 = vmatpush.msra.mxu0 %v57
    %111 = vmatpush.msra.mxu0 %v56
    %112 = vmatpush.msra.mxu0 %v55
    %113 = vmatpush.msra.mxu0 %v54
    %114 = vmatpush.msra.mxu0 %v53
    %115 = vmatpush.msra.mxu0 %v52
    %116 = vmatmul.f32.gmra.mxu0 %v50
    %v117 = vpop.f32.mrf.mxu0
    %v118 = vadd.f32 0.0, %v117
    %119 = vmatmul.f32.gmra.mxu0 %v51
    %v120 = vpop.f32.mrf.mxu0
    %v121 = vadd.f32 0.0, %v120
    %122 = vdwg.mxu0
    %v125 = vrot.slane %v118, 1
    %v126 = vrot.slane %v118, 2
    %v127 = vrot.slane %v118, 3
    %v128 = vrot.slane %v118, 4
    %v129 = vrot.slane %v118, 5
    %v130 = vrot.slane %v118, 6
    %v131 = vrot.slane %v118, 7
    %v132 = vrot.slane %v121, 1
    %v133 = vrot.slane %v121, 2
    %v134 = vrot.slane %v121, 3
    %v135 = vrot.slane %v121, 4
    %v136 = vrot.slane %v121, 5
    %v137 = vrot.slane %v121, 6
    %v138 = vrot.slane %v121, 7
    %153 = vmatpush.xpose.msra.mxu0 0.0
    %154 = vmatpush.xpose.msra.mxu0 0.0
    %155 = vmatpush.xpose.msra.mxu0 0.0
    %156 = vmatpush.xpose.msra.mxu0 0.0
    %157 = vmatpush.xpose.msra.mxu0 0.0
    %158 = vmatpush.xpose.msra.mxu0 0.0
    %159 = vmatpush.xpose.msra.mxu0 0.0
    %160 = vmatpush.xpose.msra.mxu0 0.0
    %161 = vmatpush.xpose.msra.mxu0 0.0
    %162 = vmatpush.xpose.msra.mxu0 0.0
    %163 = vmatpush.xpose.msra.mxu0 0.0
    %164 = vmatpush.xpose.msra.mxu0 0.0
    %165 = vmatpush.xpose.msra.mxu0 0.0
    %166 = vmatpush.xpose.msra.mxu0 0.0
    %167 = vmatpush.xpose.msra.mxu0 0.0
    %168 = vmatpush.xpose.msra.mxu0 %v68
    %169 = vmatmul.f32.gmra.mxu0 %v118
    %v170 = vpop.f32.mrf.mxu0
    %v171 = vadd.f32 0.0, %v170
    %172 = vdwg.mxu0
    %173 = vmatpush.xpose.msra.mxu0 0.0
    %174 = vmatpush.xpose.msra.mxu0 0.0
    %175 = vmatpush.xpose.msra.mxu0 0.0
    %176 = vmatpush.xpose.msra.mxu0 0.0
    %177 = vmatpush.xpose.msra.mxu0 0.0
    %178 = vmatpush.xpose.msra.mxu0 0.0
    %179 = vmatpush.xpose.msra.mxu0 0.0
    %180 = vmatpush.xpose.msra.mxu0 0.0
    %181 = vmatpush.xpose.msra.mxu0 0.0
    %182 = vmatpush.xpose.msra.mxu0 0.0
    %183 = vmatpush.xpose.msra.mxu0 0.0
    %184 = vmatpush.xpose.msra.mxu0 0.0
    %185 = vmatpush.xpose.msra.mxu0 0.0
    %186 = vmatpush.xpose.msra.mxu0 0.0
    %187 = vmatpush.xpose.msra.mxu0 0.0
    %188 = vmatpush.xpose.msra.mxu0 %v69
    %189 = vmatmul.f32.gmra.mxu0 %v125
    %v190 = vpop.f32.mrf.mxu0
    %v191 = vadd.f32 0.0, %v190
    %192 = vdwg.mxu0
    %193 = vmatpush.xpose.msra.mxu0 0.0
    %194 = vmatpush.xpose.msra.mxu0 0.0
    %195 = vmatpush.xpose.msra.mxu0 0.0
    %196 = vmatpush.xpose.msra.mxu0 0.0
    %197 = vmatpush.xpose.msra.mxu0 0.0
    %198 = vmatpush.xpose.msra.mxu0 0.0
    %199 = vmatpush.xpose.msra.mxu0 0.0
    %200 = vmatpush.xpose.msra.mxu0 0.0
    %201 = vmatpush.xpose.msra.mxu0 0.0
    %202 = vmatpush.xpose.msra.mxu0 0.0
    %203 = vmatpush.xpose.msra.mxu0 0.0
    %204 = vmatpush.xpose.msra.mxu0 0.0
    %205 = vmatpush.xpose.msra.mxu0 0.0
    %206 = vmatpush.xpose.msra.mxu0 0.0
    %207 = vmatpush.xpose.msra.mxu0 0.0
    %208 = vmatpush.xpose.msra.mxu0 %v70
    %209 = vmatmul.f32.gmra.mxu0 %v126
    %v210 = vpop.f32.mrf.mxu0
    %v211 = vadd.f32 0.0, %v210
    %212 = vdwg.mxu0
    %213 = vmatpush.xpose.msra.mxu0 0.0
    %214 = vmatpush.xpose.msra.mxu0 0.0
    %215 = vmatpush.xpose.msra.mxu0 0.0
    %216 = vmatpush.xpose.msra.mxu0 0.0
    %217 = vmatpush.xpose.msra.mxu0 0.0
    %218 = vmatpush.xpose.msra.mxu0 0.0
    %219 = vmatpush.xpose.msra.mxu0 0.0
    %220 = vmatpush.xpose.msra.mxu0 0.0
    %221 = vmatpush.xpose.msra.mxu0 0.0
    %222 = vmatpush.xpose.msra.mxu0 0.0
    %223 = vmatpush.xpose.msra.mxu0 0.0
    %224 = vmatpush.xpose.msra.mxu0 0.0
    %225 = vmatpush.xpose.msra.mxu0 0.0
    %226 = vmatpush.xpose.msra.mxu0 0.0
    %227 = vmatpush.xpose.msra.mxu0 0.0
    %228 = vmatpush.xpose.msra.mxu0 %v71
    %229 = vmatmul.f32.gmra.mxu0 %v127
    %v230 = vpop.f32.mrf.mxu0
    %v231 = vadd.f32 0.0, %v230
    %232 = vdwg.mxu0
    %233 = vmatpush.xpose.msra.mxu0 0.0
    %234 = vmatpush.xpose.msra.mxu0 0.0
    %235 = vmatpush.xpose.msra.mxu0 0.0
    %236 = vmatpush.xpose.msra.mxu0 0.0
    %237 = vmatpush.xpose.msra.mxu0 0.0
    %238 = vmatpush.xpose.msra.mxu0 0.0
    %239 = vmatpush.xpose.msra.mxu0 0.0
    %240 = vmatpush.xpose.msra.mxu0 0.0
    %241 = vmatpush.xpose.msra.mxu0 0.0
    %242 = vmatpush.xpose.msra.mxu0 0.0
    %243 = vmatpush.xpose.msra.mxu0 0.0
    %244 = vmatpush.xpose.msra.mxu0 0.0
    %245 = vmatpush.xpose.msra.mxu0 0.0
    %246 = vmatpush.xpose.msra.mxu0 0.0
    %247 = vmatpush.xpose.msra.mxu0 0.0
    %248 = vmatpush.xpose.msra.mxu0 %v72
    %249 = vmatmul.f32.gmra.mxu0 %v128
    %v250 = vpop.f32.mrf.mxu0
    %v251 = vadd.f32 0.0, %v250
    %252 = vdwg.mxu0
    %253 = vmatpush.xpose.msra.mxu0 0.0
    %254 = vmatpush.xpose.msra.mxu0 0.0
    %255 = vmatpush.xpose.msra.mxu0 0.0
    %256 = vmatpush.xpose.msra.mxu0 0.0
    %257 = vmatpush.xpose.msra.mxu0 0.0
    %258 = vmatpush.xpose.msra.mxu0 0.0
    %259 = vmatpush.xpose.msra.mxu0 0.0
    %260 = vmatpush.xpose.msra.mxu0 0.0
    %261 = vmatpush.xpose.msra.mxu0 0.0
    %262 = vmatpush.xpose.msra.mxu0 0.0
    %263 = vmatpush.xpose.msra.mxu0 0.0
    %264 = vmatpush.xpose.msra.mxu0 0.0
    %265 = vmatpush.xpose.msra.mxu0 0.0
    %266 = vmatpush.xpose.msra.mxu0 0.0
    %267 = vmatpush.xpose.msra.mxu0 0.0
    %268 = vmatpush.xpose.msra.mxu0 %v73
    %269 = vmatmul.f32.gmra.mxu0 %v129
    %v270 = vpop.f32.mrf.mxu0
    %v271 = vadd.f32 0.0, %v270
    %272 = vdwg.mxu0
    %273 = vmatpush.xpose.msra.mxu0 0.0
    %274 = vmatpush.xpose.msra.mxu0 0.0
    %275 = vmatpush.xpose.msra.mxu0 0.0
    %276 = vmatpush.xpose.msra.mxu0 0.0
    %277 = vmatpush.xpose.msra.mxu0 0.0
    %278 = vmatpush.xpose.msra.mxu0 0.0
    %279 = vmatpush.xpose.msra.mxu0 0.0
    %280 = vmatpush.xpose.msra.mxu0 0.0
    %281 = vmatpush.xpose.msra.mxu0 0.0
    %282 = vmatpush.xpose.msra.mxu0 0.0
    %283 = vmatpush.xpose.msra.mxu0 0.0
    %284 = vmatpush.xpose.msra.mxu0 0.0
    %285 = vmatpush.xpose.msra.mxu0 0.0
    %286 = vmatpush.xpose.msra.mxu0 0.0
    %287 = vmatpush.xpose.msra.mxu0 0.0
    %288 = vmatpush.xpose.msra.mxu0 %v74
    %289 = vmatmul.f32.gmra.mxu0 %v130
    %v290 = vpop.f32.mrf.mxu0
    %v291 = vadd.f32 0.0, %v290
    %292 = vdwg.mxu0
    %293 = vmatpush.xpose.msra.mxu0 0.0
    %294 = vmatpush.xpose.msra.mxu0 0.0
    %295 = vmatpush.xpose.msra.mxu0 0.0
    %296 = vmatpush.xpose.msra.mxu0 0.0
    %297 = vmatpush.xpose.msra.mxu0 0.0
    %298 = vmatpush.xpose.msra.mxu0 0.0
    %299 = vmatpush.xpose.msra.mxu0 0.0
    %300 = vmatpush.xpose.msra.mxu0 0.0
    %301 = vmatpush.xpose.msra.mxu0 0.0
    %302 = vmatpush.xpose.msra.mxu0 0.0
    %303 = vmatpush.xpose.msra.mxu0 0.0
    %304 = vmatpush.xpose.msra.mxu0 0.0
    %305 = vmatpush.xpose.msra.mxu0 0.0
    %306 = vmatpush.xpose.msra.mxu0 0.0
    %307 = vmatpush.xpose.msra.mxu0 0.0
    %308 = vmatpush.xpose.msra.mxu0 %v75
    %309 = vmatmul.f32.gmra.mxu0 %v131
    %v310 = vpop.f32.mrf.mxu0
    %v311 = vadd.f32 0.0, %v310
    %312 = vdwg.mxu0
    %313 = vmatpush.xpose.msra.mxu0 0.0
    %314 = vmatpush.xpose.msra.mxu0 0.0
    %315 = vmatpush.xpose.msra.mxu0 0.0
    %316 = vmatpush.xpose.msra.mxu0 0.0
    %317 = vmatpush.xpose.msra.mxu0 0.0
    %318 = vmatpush.xpose.msra.mxu0 0.0
    %319 = vmatpush.xpose.msra.mxu0 0.0
    %320 = vmatpush.xpose.msra.mxu0 0.0
    %321 = vmatpush.xpose.msra.mxu0 0.0
    %322 = vmatpush.xpose.msra.mxu0 0.0
    %323 = vmatpush.xpose.msra.mxu0 0.0
    %324 = vmatpush.xpose.msra.mxu0 0.0
    %325 = vmatpush.xpose.msra.mxu0 0.0
    %326 = vmatpush.xpose.msra.mxu0 0.0
    %327 = vmatpush.xpose.msra.mxu0 0.0
    %328 = vmatpush.xpose.msra.mxu0 %v76
    %329 = vmatmul.f32.gmra.mxu0 %v121
    %v330 = vpop.f32.mrf.mxu0
    %v331 = vadd.f32 0.0, %v330
    %332 = vdwg.mxu0
    %333 = vmatpush.xpose.msra.mxu0 0.0
    %334 = vmatpush.xpose.msra.mxu0 0.0
    %335 = vmatpush.xpose.msra.mxu0 0.0
    %336 = vmatpush.xpose.msra.mxu0 0.0
    %337 = vmatpush.xpose.msra.mxu0 0.0
    %338 = vmatpush.xpose.msra.mxu0 0.0
    %339 = vmatpush.xpose.msra.mxu0 0.0
    %340 = vmatpush.xpose.msra.mxu0 0.0
    %341 = vmatpush.xpose.msra.mxu0 0.0
    %342 = vmatpush.xpose.msra.mxu0 0.0
    %343 = vmatpush.xpose.msra.mxu0 0.0
    %344 = vmatpush.xpose.msra.mxu0 0.0
    %345 = vmatpush.xpose.msra.mxu0 0.0
    %346 = vmatpush.xpose.msra.mxu0 0.0
    %347 = vmatpush.xpose.msra.mxu0 0.0
    %348 = vmatpush.xpose.msra.mxu0 %v77
    %349 = vmatmul.f32.gmra.mxu0 %v132
    %v350 = vpop.f32.mrf.mxu0
    %v351 = vadd.f32 0.0, %v350
    %352 = vdwg.mxu0
    %353 = vmatpush.xpose.msra.mxu0 0.0
    %354 = vmatpush.xpose.msra.mxu0 0.0
    %355 = vmatpush.xpose.msra.mxu0 0.0
    %356 = vmatpush.xpose.msra.mxu0 0.0
    %357 = vmatpush.xpose.msra.mxu0 0.0
    %358 = vmatpush.xpose.msra.mxu0 0.0
    %359 = vmatpush.xpose.msra.mxu0 0.0
    %360 = vmatpush.xpose.msra.mxu0 0.0
    %361 = vmatpush.xpose.msra.mxu0 0.0
    %362 = vmatpush.xpose.msra.mxu0 0.0
    %363 = vmatpush.xpose.msra.mxu0 0.0
    %364 = vmatpush.xpose.msra.mxu0 0.0
    %365 = vmatpush.xpose.msra.mxu0 0.0
    %366 = vmatpush.xpose.msra.mxu0 0.0
    %367 = vmatpush.xpose.msra.mxu0 0.0
    %368 = vmatpush.xpose.msra.mxu0 %v78
    %369 = vmatmul.f32.gmra.mxu0 %v133
    %v370 = vpop.f32.mrf.mxu0
    %v371 = vadd.f32 0.0, %v370
    %372 = vdwg.mxu0
    %373 = vmatpush.xpose.msra.mxu0 0.0
    %374 = vmatpush.xpose.msra.mxu0 0.0
    %375 = vmatpush.xpose.msra.mxu0 0.0
    %376 = vmatpush.xpose.msra.mxu0 0.0
    %377 = vmatpush.xpose.msra.mxu0 0.0
    %378 = vmatpush.xpose.msra.mxu0 0.0
    %379 = vmatpush.xpose.msra.mxu0 0.0
    %380 = vmatpush.xpose.msra.mxu0 0.0
    %381 = vmatpush.xpose.msra.mxu0 0.0
    %382 = vmatpush.xpose.msra.mxu0 0.0
    %383 = vmatpush.xpose.msra.mxu0 0.0
    %384 = vmatpush.xpose.msra.mxu0 0.0
    %385 = vmatpush.xpose.msra.mxu0 0.0
    %386 = vmatpush.xpose.msra.mxu0 0.0
    %387 = vmatpush.xpose.msra.mxu0 0.0
    %388 = vmatpush.xpose.msra.mxu0 %v79
    %389 = vmatmul.f32.gmra.mxu0 %v134
    %v390 = vpop.f32.mrf.mxu0
    %v391 = vadd.f32 0.0, %v390
    %392 = vdwg.mxu0
    %393 = vmatpush.xpose.msra.mxu0 0.0
    %394 = vmatpush.xpose.msra.mxu0 0.0
    %395 = vmatpush.xpose.msra.mxu0 0.0
    %396 = vmatpush.xpose.msra.mxu0 0.0
    %397 = vmatpush.xpose.msra.mxu0 0.0
    %398 = vmatpush.xpose.msra.mxu0 0.0
    %399 = vmatpush.xpose.msra.mxu0 0.0
    %400 = vmatpush.xpose.msra.mxu0 0.0
    %401 = vmatpush.xpose.msra.mxu0 0.0
    %402 = vmatpush.xpose.msra.mxu0 0.0
    %403 = vmatpush.xpose.msra.mxu0 0.0
    %404 = vmatpush.xpose.msra.mxu0 0.0
    %405 = vmatpush.xpose.msra.mxu0 0.0
    %406 = vmatpush.xpose.msra.mxu0 0.0
    %407 = vmatpush.xpose.msra.mxu0 0.0
    %408 = vmatpush.xpose.msra.mxu0 %v80
    %409 = vmatmul.f32.gmra.mxu0 %v135
    %v410 = vpop.f32.mrf.mxu0
    %v411 = vadd.f32 0.0, %v410
    %412 = vdwg.mxu0
    %413 = vmatpush.xpose.msra.mxu0 0.0
    %414 = vmatpush.xpose.msra.mxu0 0.0
    %415 = vmatpush.xpose.msra.mxu0 0.0
    %416 = vmatpush.xpose.msra.mxu0 0.0
    %417 = vmatpush.xpose.msra.mxu0 0.0
    %418 = vmatpush.xpose.msra.mxu0 0.0
    %419 = vmatpush.xpose.msra.mxu0 0.0
    %420 = vmatpush.xpose.msra.mxu0 0.0
    %421 = vmatpush.xpose.msra.mxu0 0.0
    %422 = vmatpush.xpose.msra.mxu0 0.0
    %423 = vmatpush.xpose.msra.mxu0 0.0
    %424 = vmatpush.xpose.msra.mxu0 0.0
    %425 = vmatpush.xpose.msra.mxu0 0.0
    %426 = vmatpush.xpose.msra.mxu0 0.0
    %427 = vmatpush.xpose.msra.mxu0 0.0
    %428 = vmatpush.xpose.msra.mxu0 %v81
    %429 = vmatmul.f32.gmra.mxu0 %v136
    %v430 = vpop.f32.mrf.mxu0
    %v431 = vadd.f32 0.0, %v430
    %432 = vdwg.mxu0
    %433 = vmatpush.xpose.msra.mxu0 0.0
    %434 = vmatpush.xpose.msra.mxu0 0.0
    %435 = vmatpush.xpose.msra.mxu0 0.0
    %436 = vmatpush.xpose.msra.mxu0 0.0
    %437 = vmatpush.xpose.msra.mxu0 0.0
    %438 = vmatpush.xpose.msra.mxu0 0.0
    %439 = vmatpush.xpose.msra.mxu0 0.0
    %440 = vmatpush.xpose.msra.mxu0 0.0
    %441 = vmatpush.xpose.msra.mxu0 0.0
    %442 = vmatpush.xpose.msra.mxu0 0.0
    %443 = vmatpush.xpose.msra.mxu0 0.0
    %444 = vmatpush.xpose.msra.mxu0 0.0
    %445 = vmatpush.xpose.msra.mxu0 0.0
    %446 = vmatpush.xpose.msra.mxu0 0.0
    %447 = vmatpush.xpose.msra.mxu0 0.0
    %448 = vmatpush.xpose.msra.mxu0 %v82
    %449 = vmatmul.f32.gmra.mxu0 %v137
    %v450 = vpop.f32.mrf.mxu0
    %v451 = vadd.f32 0.0, %v450
    %452 = vdwg.mxu0
    %453 = vmatpush.xpose.msra.mxu0 0.0
    %454 = vmatpush.xpose.msra.mxu0 0.0
    %455 = vmatpush.xpose.msra.mxu0 0.0
    %456 = vmatpush.xpose.msra.mxu0 0.0
    %457 = vmatpush.xpose.msra.mxu0 0.0
    %458 = vmatpush.xpose.msra.mxu0 0.0
    %459 = vmatpush.xpose.msra.mxu0 0.0
    %460 = vmatpush.xpose.msra.mxu0 0.0
    %461 = vmatpush.xpose.msra.mxu0 0.0
    %462 = vmatpush.xpose.msra.mxu0 0.0
    %463 = vmatpush.xpose.msra.mxu0 0.0
    %464 = vmatpush.xpose.msra.mxu0 0.0
    %465 = vmatpush.xpose.msra.mxu0 0.0
    %466 = vmatpush.xpose.msra.mxu0 0.0
    %467 = vmatpush.xpose.msra.mxu0 0.0
    %468 = vmatpush.xpose.msra.mxu0 %v83
    %469 = vmatmul.f32.gmra.mxu0 %v138
    %v470 = vpop.f32.mrf.mxu0
    %v471 = vadd.f32 0.0, %v470
    %472 = vdwg.mxu0
    %v473 = vlaneseq
    %v474 = vand.u32 %v473, 127
    %475 = vset.pattern.permute.xlu0 0
    %476 = vperm.xlu0 %475, %v84
    %v477 = vpop.permute.xlu0 %476
    %v478 = vperm.slane %v477, 0
    %479 = vset.pattern.permute.xlu0 0
    %480 = vperm.xlu0 %479, %v85
    %v481 = vpop.permute.xlu0 %480
    %v482 = vperm.slane %v481, 0
    %483 = vset.pattern.permute.xlu0 0
    %484 = vperm.xlu0 %483, %v86
    %v485 = vpop.permute.xlu0 %484
    %v486 = vperm.slane %v485, 0
    %487 = vset.pattern.permute.xlu0 0
    %488 = vperm.xlu0 %487, %v87
    %v489 = vpop.permute.xlu0 %488
    %v490 = vperm.slane %v489, 0
    %491 = vset.pattern.permute.xlu0 0
    %492 = vperm.xlu0 %491, %v88
    %v493 = vpop.permute.xlu0 %492
    %v494 = vperm.slane %v493, 0
    %495 = vset.pattern.permute.xlu0 0
    %496 = vperm.xlu0 %495, %v89
    %v497 = vpop.permute.xlu0 %496
    %v498 = vperm.slane %v497, 0
    %499 = vset.pattern.permute.xlu0 0
    %500 = vperm.xlu0 %499, %v90
    %v501 = vpop.permute.xlu0 %500
    %v502 = vperm.slane %v501, 0
    %503 = vset.pattern.permute.xlu0 0
    %504 = vperm.xlu0 %503, %v91
    %v505 = vpop.permute.xlu0 %504
    %v506 = vperm.slane %v505, 0
    %507 = vset.pattern.permute.xlu0 0
    %508 = vperm.xlu0 %507, %v92
    %v509 = vpop.permute.xlu0 %508
    %v510 = vperm.slane %v509, 0
    %511 = vset.pattern.permute.xlu0 0
    %512 = vperm.xlu0 %511, %v93
    %v513 = vpop.permute.xlu0 %512
    %v514 = vperm.slane %v513, 0
    %515 = vset.pattern.permute.xlu0 0
    %516 = vperm.xlu0 %515, %v94
    %v517 = vpop.permute.xlu0 %516
    %v518 = vperm.slane %v517, 0
    %519 = vset.pattern.permute.xlu0 0
    %520 = vperm.xlu0 %519, %v95
    %v521 = vpop.permute.xlu0 %520
    %v522 = vperm.slane %v521, 0
    %523 = vset.pattern.permute.xlu0 0
    %524 = vperm.xlu0 %523, %v96
    %v525 = vpop.permute.xlu0 %524
    %v526 = vperm.slane %v525, 0
    %527 = vset.pattern.permute.xlu0 0
    %528 = vperm.xlu0 %527, %v97
    %v529 = vpop.permute.xlu0 %528
    %v530 = vperm.slane %v529, 0
    %531 = vset.pattern.permute.xlu0 0
    %532 = vperm.xlu0 %531, %v98
    %v533 = vpop.permute.xlu0 %532
    %v534 = vperm.slane %v533, 0
    %535 = vset.pattern.permute.xlu0 0
    %536 = vperm.xlu0 %535, %v99
    %v537 = vpop.permute.xlu0 %536
    %v538 = vperm.slane %v537, 0
    %vm539 = vcmp.lt.s32.totalorder %v474, %v478
    %vm540 = vcmp.lt.s32.totalorder %v474, %v482
    %vm541 = vcmp.lt.s32.totalorder %v474, %v486
    %vm542 = vcmp.lt.s32.totalorder %v474, %v490
    %vm543 = vcmp.lt.s32.totalorder %v474, %v494
    %vm544 = vcmp.lt.s32.totalorder %v474, %v498
    %vm545 = vcmp.lt.s32.totalorder %v474, %v502
    %vm546 = vcmp.lt.s32.totalorder %v474, %v506
    %vm547 = vcmp.lt.s32.totalorder %v474, %v510
    %vm548 = vcmp.lt.s32.totalorder %v474, %v514
    %vm549 = vcmp.lt.s32.totalorder %v474, %v518
    %vm550 = vcmp.lt.s32.totalorder %v474, %v522
    %vm551 = vcmp.lt.s32.totalorder %v474, %v526
    %vm552 = vcmp.lt.s32.totalorder %v474, %v530
    %vm553 = vcmp.lt.s32.totalorder %v474, %v534
    %vm554 = vcmp.lt.s32.totalorder %v474, %v538
    %vm555 = vcmp.gt.s32.totalorder %v84, 0
    %vm556 = vcmp.gt.s32.totalorder %v85, 0
    %vm557 = vcmp.gt.s32.totalorder %v86, 0
    %vm558 = vcmp.gt.s32.totalorder %v87, 0
    %vm559 = vcmp.gt.s32.totalorder %v88, 0
    %vm560 = vcmp.gt.s32.totalorder %v89, 0
    %vm561 = vcmp.gt.s32.totalorder %v90, 0
    %vm562 = vcmp.gt.s32.totalorder %v91, 0
    %vm563 = vcmp.gt.s32.totalorder %v92, 0
    %vm564 = vcmp.gt.s32.totalorder %v93, 0
    %vm565 = vcmp.gt.s32.totalorder %v94, 0
    %vm566 = vcmp.gt.s32.totalorder %v95, 0
    %vm567 = vcmp.gt.s32.totalorder %v96, 0
    %vm568 = vcmp.gt.s32.totalorder %v97, 0
    %vm569 = vcmp.gt.s32.totalorder %v98, 0
    %vm570 = vcmp.gt.s32.totalorder %v99, 0
    %v571 = vsel %vm539, %v171, -1e+30
    %v572 = vsel %vm540, %v191, -1e+30
    %v573 = vsel %vm541, %v211, -1e+30
    %v574 = vsel %vm542, %v231, -1e+30
    %v575 = vsel %vm543, %v251, -1e+30
    %v576 = vsel %vm544, %v271, -1e+30
    %v577 = vsel %vm545, %v291, -1e+30
    %v578 = vsel %vm546, %v311, -1e+30
    %v579 = vsel %vm547, %v331, -1e+30
    %v580 = vsel %vm548, %v351, -1e+30
    %v581 = vsel %vm549, %v371, -1e+30
    %v582 = vsel %vm550, %v391, -1e+30
    %v583 = vsel %vm551, %v411, -1e+30
    %v584 = vsel %vm552, %v431, -1e+30
    %v585 = vsel %vm553, %v451, -1e+30
    %v586 = vsel %vm554, %v471, -1e+30
    %vm587 = vcmask 57344
    %v588 = vsel %vm587, %v571, -inf
    %589 = vmax.xlane.f32.xlu0 %v588
    %v590 = vpop.xlane.xlu0 %589
    %v591 = vsel %vm587, %v572, -inf
    %592 = vmax.xlane.f32.xlu0 %v591
    %v593 = vpop.xlane.xlu0 %592
    %v594 = vsel %vm587, %v573, -inf
    %595 = vmax.xlane.f32.xlu0 %v594
    %v596 = vpop.xlane.xlu0 %595
    %v597 = vsel %vm587, %v574, -inf
    %598 = vmax.xlane.f32.xlu0 %v597
    %v599 = vpop.xlane.xlu0 %598
    %v600 = vsel %vm587, %v575, -inf
    %601 = vmax.xlane.f32.xlu0 %v600
    %v602 = vpop.xlane.xlu0 %601
    %v603 = vsel %vm587, %v576, -inf
    %604 = vmax.xlane.f32.xlu0 %v603
    %v605 = vpop.xlane.xlu0 %604
    %v606 = vsel %vm587, %v577, -inf
    %607 = vmax.xlane.f32.xlu0 %v606
    %v608 = vpop.xlane.xlu0 %607
    %v609 = vsel %vm587, %v578, -inf
    %610 = vmax.xlane.f32.xlu0 %v609
    %v611 = vpop.xlane.xlu0 %610
    %v612 = vsel %vm587, %v579, -inf
    %613 = vmax.xlane.f32.xlu0 %v612
    %v614 = vpop.xlane.xlu0 %613
    %v615 = vsel %vm587, %v580, -inf
    %616 = vmax.xlane.f32.xlu0 %v615
    %v617 = vpop.xlane.xlu0 %616
    %v618 = vsel %vm587, %v581, -inf
    %619 = vmax.xlane.f32.xlu0 %v618
    %v620 = vpop.xlane.xlu0 %619
    %v621 = vsel %vm587, %v582, -inf
    %622 = vmax.xlane.f32.xlu0 %v621
    %v623 = vpop.xlane.xlu0 %622
    %v624 = vsel %vm587, %v583, -inf
    %625 = vmax.xlane.f32.xlu0 %v624
    %v626 = vpop.xlane.xlu0 %625
    %v627 = vsel %vm587, %v584, -inf
    %628 = vmax.xlane.f32.xlu0 %v627
    %v629 = vpop.xlane.xlu0 %628
    %v630 = vsel %vm587, %v585, -inf
    %631 = vmax.xlane.f32.xlu0 %v630
    %v632 = vpop.xlane.xlu0 %631
    %v633 = vsel %vm587, %v586, -inf
    %634 = vmax.xlane.f32.xlu0 %v633
    %v635 = vpop.xlane.xlu0 %634
    %v636 = vsel %vm555, %v590, 0.0
    %v637 = vsel %vm556, %v593, 0.0
    %v638 = vsel %vm557, %v596, 0.0
    %v639 = vsel %vm558, %v599, 0.0
    %v640 = vsel %vm559, %v602, 0.0
    %v641 = vsel %vm560, %v605, 0.0
    %v642 = vsel %vm561, %v608, 0.0
    %v643 = vsel %vm562, %v611, 0.0
    %v644 = vsel %vm563, %v614, 0.0
    %v645 = vsel %vm564, %v617, 0.0
    %v646 = vsel %vm565, %v620, 0.0
    %v647 = vsel %vm566, %v623, 0.0
    %v648 = vsel %vm567, %v626, 0.0
    %v649 = vsel %vm568, %v629, 0.0
    %v650 = vsel %vm569, %v632, 0.0
    %v651 = vsel %vm570, %v635, 0.0
    %653 = vset.pattern.permute.xlu0 0
    %654 = vperm.xlu0 %653, %v636
    %v655 = vpop.permute.xlu0 %654
    %v657 = vperm.slane %v655, 0
    %659 = vset.pattern.permute.xlu0 0
    %660 = vperm.xlu0 %659, %v637
    %v661 = vpop.permute.xlu0 %660
    %v663 = vperm.slane %v661, 0
    %665 = vset.pattern.permute.xlu0 0
    %666 = vperm.xlu0 %665, %v638
    %v667 = vpop.permute.xlu0 %666
    %v669 = vperm.slane %v667, 0
    %671 = vset.pattern.permute.xlu0 0
    %672 = vperm.xlu0 %671, %v639
    %v673 = vpop.permute.xlu0 %672
    %v675 = vperm.slane %v673, 0
    %677 = vset.pattern.permute.xlu0 0
    %678 = vperm.xlu0 %677, %v640
    %v679 = vpop.permute.xlu0 %678
    %v681 = vperm.slane %v679, 0
    %683 = vset.pattern.permute.xlu0 0
    %684 = vperm.xlu0 %683, %v641
    %v685 = vpop.permute.xlu0 %684
    %v687 = vperm.slane %v685, 0
    %689 = vset.pattern.permute.xlu0 0
    %690 = vperm.xlu0 %689, %v642
    %v691 = vpop.permute.xlu0 %690
    %v693 = vperm.slane %v691, 0
    %695 = vset.pattern.permute.xlu0 0
    %696 = vperm.xlu0 %695, %v643
    %v697 = vpop.permute.xlu0 %696
    %v699 = vperm.slane %v697, 0
    %701 = vset.pattern.permute.xlu0 0
    %702 = vperm.xlu0 %701, %v644
    %v703 = vpop.permute.xlu0 %702
    %v705 = vperm.slane %v703, 0
    %707 = vset.pattern.permute.xlu0 0
    %708 = vperm.xlu0 %707, %v645
    %v709 = vpop.permute.xlu0 %708
    %v711 = vperm.slane %v709, 0
    %713 = vset.pattern.permute.xlu0 0
    %714 = vperm.xlu0 %713, %v646
    %v715 = vpop.permute.xlu0 %714
    %v717 = vperm.slane %v715, 0
    %719 = vset.pattern.permute.xlu0 0
    %720 = vperm.xlu0 %719, %v647
    %v721 = vpop.permute.xlu0 %720
    %v723 = vperm.slane %v721, 0
    %725 = vset.pattern.permute.xlu0 0
    %726 = vperm.xlu0 %725, %v648
    %v727 = vpop.permute.xlu0 %726
    %v729 = vperm.slane %v727, 0
    %731 = vset.pattern.permute.xlu0 0
    %732 = vperm.xlu0 %731, %v649
    %v733 = vpop.permute.xlu0 %732
    %v735 = vperm.slane %v733, 0
    %737 = vset.pattern.permute.xlu0 0
    %738 = vperm.xlu0 %737, %v650
    %v739 = vpop.permute.xlu0 %738
    %v741 = vperm.slane %v739, 0
    %743 = vset.pattern.permute.xlu0 0
    %744 = vperm.xlu0 %743, %v651
    %v745 = vpop.permute.xlu0 %744
    %v747 = vperm.slane %v745, 0
    %v748 = vsub.f32 %v571, %v657
    %v749 = vsub.f32 %v572, %v663
    %v750 = vsub.f32 %v573, %v669
    %v751 = vsub.f32 %v574, %v675
    %v752 = vsub.f32 %v575, %v681
    %v753 = vsub.f32 %v576, %v687
    %v754 = vsub.f32 %v577, %v693
    %v755 = vsub.f32 %v578, %v699
    %v756 = vsub.f32 %v579, %v705
    %v757 = vsub.f32 %v580, %v711
    %v758 = vsub.f32 %v581, %v717
    %v759 = vsub.f32 %v582, %v723
    %v760 = vsub.f32 %v583, %v729
    %v761 = vsub.f32 %v584, %v735
    %v762 = vsub.f32 %v585, %v741
    %v763 = vsub.f32 %v586, %v747
    %v764 = vmul.f32 %v748, 1.442695
    %v765 = vpow.pop %v764
    %v766 = vmul.f32 %v749, 1.442695
    %v767 = vpow.pop %v766
    %v768 = vmul.f32 %v750, 1.442695
    %v769 = vpow.pop %v768
    %v770 = vmul.f32 %v751, 1.442695
    %v771 = vpow.pop %v770
    %v772 = vmul.f32 %v752, 1.442695
    %v773 = vpow.pop %v772
    %v774 = vmul.f32 %v753, 1.442695
    %v775 = vpow.pop %v774
    %v776 = vmul.f32 %v754, 1.442695
    %v777 = vpow.pop %v776
    %v778 = vmul.f32 %v755, 1.442695
    %v779 = vpow.pop %v778
    %v780 = vmul.f32 %v756, 1.442695
    %v781 = vpow.pop %v780
    %v782 = vmul.f32 %v757, 1.442695
    %v783 = vpow.pop %v782
    %v784 = vmul.f32 %v758, 1.442695
    %v785 = vpow.pop %v784
    %v786 = vmul.f32 %v759, 1.442695
    %v787 = vpow.pop %v786
    %v788 = vmul.f32 %v760, 1.442695
    %v789 = vpow.pop %v788
    %v790 = vmul.f32 %v761, 1.442695
    %v791 = vpow.pop %v790
    %v792 = vmul.f32 %v762, 1.442695
    %v793 = vpow.pop %v792
    %v794 = vmul.f32 %v763, 1.442695
    %v795 = vpow.pop %v794
    %v796 = vsel %vm539, %v765, 0.0
    %v797 = vsel %vm540, %v767, 0.0
    %v798 = vsel %vm541, %v769, 0.0
    %v799 = vsel %vm542, %v771, 0.0
    %v800 = vsel %vm543, %v773, 0.0
    %v801 = vsel %vm544, %v775, 0.0
    %v802 = vsel %vm545, %v777, 0.0
    %v803 = vsel %vm546, %v779, 0.0
    %v804 = vsel %vm547, %v781, 0.0
    %v805 = vsel %vm548, %v783, 0.0
    %v806 = vsel %vm549, %v785, 0.0
    %v807 = vsel %vm550, %v787, 0.0
    %v808 = vsel %vm551, %v789, 0.0
    %v809 = vsel %vm552, %v791, 0.0
    %v810 = vsel %vm553, %v793, 0.0
    %v811 = vsel %vm554, %v795, 0.0
    %v812 = vsel %vm587, %v796, 0.0
    %813 = vadd.xlane.f32.xlu0 %v812
    %v814 = vpop.xlane.xlu0 %813
    %v815 = vsel %vm587, %v797, 0.0
    %816 = vadd.xlane.f32.xlu0 %v815
    %v817 = vpop.xlane.xlu0 %816
    %v818 = vsel %vm587, %v798, 0.0
    %819 = vadd.xlane.f32.xlu0 %v818
    %v820 = vpop.xlane.xlu0 %819
    %v821 = vsel %vm587, %v799, 0.0
    %822 = vadd.xlane.f32.xlu0 %v821
    %v823 = vpop.xlane.xlu0 %822
    %v824 = vsel %vm587, %v800, 0.0
    %825 = vadd.xlane.f32.xlu0 %v824
    %v826 = vpop.xlane.xlu0 %825
    %v827 = vsel %vm587, %v801, 0.0
    %828 = vadd.xlane.f32.xlu0 %v827
    %v829 = vpop.xlane.xlu0 %828
    %v830 = vsel %vm587, %v802, 0.0
    %831 = vadd.xlane.f32.xlu0 %v830
    %v832 = vpop.xlane.xlu0 %831
    %v833 = vsel %vm587, %v803, 0.0
    %834 = vadd.xlane.f32.xlu0 %v833
    %v835 = vpop.xlane.xlu0 %834
    %v836 = vsel %vm587, %v804, 0.0
    %837 = vadd.xlane.f32.xlu0 %v836
    %v838 = vpop.xlane.xlu0 %837
    %v839 = vsel %vm587, %v805, 0.0
    %840 = vadd.xlane.f32.xlu0 %v839
    %v841 = vpop.xlane.xlu0 %840
    %v842 = vsel %vm587, %v806, 0.0
    %843 = vadd.xlane.f32.xlu0 %v842
    %v844 = vpop.xlane.xlu0 %843
    %v845 = vsel %vm587, %v807, 0.0
    %846 = vadd.xlane.f32.xlu0 %v845
    %v847 = vpop.xlane.xlu0 %846
    %v848 = vsel %vm587, %v808, 0.0
    %849 = vadd.xlane.f32.xlu0 %v848
    %v850 = vpop.xlane.xlu0 %849
    %v851 = vsel %vm587, %v809, 0.0
    %852 = vadd.xlane.f32.xlu0 %v851
    %v853 = vpop.xlane.xlu0 %852
    %v854 = vsel %vm587, %v810, 0.0
    %855 = vadd.xlane.f32.xlu0 %v854
    %v856 = vpop.xlane.xlu0 %855
    %v857 = vsel %vm587, %v811, 0.0
    %858 = vadd.xlane.f32.xlu0 %v857
    %v859 = vpop.xlane.xlu0 %858
    %v860 = vmax.f32 %v814, 1e-30
    %v861 = vmax.f32 %v817, 1e-30
    %v862 = vmax.f32 %v820, 1e-30
    %v863 = vmax.f32 %v823, 1e-30
    %v864 = vmax.f32 %v826, 1e-30
    %v865 = vmax.f32 %v829, 1e-30
    %v866 = vmax.f32 %v832, 1e-30
    %v867 = vmax.f32 %v835, 1e-30
    %v868 = vmax.f32 %v838, 1e-30
    %v869 = vmax.f32 %v841, 1e-30
    %v870 = vmax.f32 %v844, 1e-30
    %v871 = vmax.f32 %v847, 1e-30
    %v872 = vmax.f32 %v850, 1e-30
    %v873 = vmax.f32 %v853, 1e-30
    %v874 = vmax.f32 %v856, 1e-30
    %v875 = vmax.f32 %v859, 1e-30
    %v876 = vrcp.pop %v860
    %v877 = vmul.f32 %v860, %v876
    %v878 = vsub.f32 1.0, %v877
    %v879 = vmul.f32 %v876, %v878
    %v880 = vadd.f32 %v876, %v879
    %vm881 = vweird.f32 %v860
    %vm882 = vweird.f32 %v876
    %vm883 = vmor %vm881, %vm882
    %v884 = vsel %vm883, %v876, %v880
    %v885 = vand.u32 2147483647, %v860
    %vm886 = vcmp.eq.f32.partialorder %v885, 8.507059e+37
    %v887 = vand.u32 %v860, 2147483648
    %v888 = vor.u32 1.1754944e-38, %v887
    %v889 = vsel %vm886, %v888, %v884
    %v890 = vmul.f32 %v796, %v889
    %v891 = vrcp.pop %v861
    %v892 = vmul.f32 %v861, %v891
    %v893 = vsub.f32 1.0, %v892
    %v894 = vmul.f32 %v891, %v893
    %v895 = vadd.f32 %v891, %v894
    %vm896 = vweird.f32 %v861
    %vm897 = vweird.f32 %v891
    %vm898 = vmor %vm896, %vm897
    %v899 = vsel %vm898, %v891, %v895
    %v900 = vand.u32 2147483647, %v861
    %vm901 = vcmp.eq.f32.partialorder %v900, 8.507059e+37
    %v902 = vand.u32 %v861, 2147483648
    %v903 = vor.u32 1.1754944e-38, %v902
    %v904 = vsel %vm901, %v903, %v899
    %v905 = vmul.f32 %v797, %v904
    %v906 = vrcp.pop %v862
    %v907 = vmul.f32 %v862, %v906
    %v908 = vsub.f32 1.0, %v907
    %v909 = vmul.f32 %v906, %v908
    %v910 = vadd.f32 %v906, %v909
    %vm911 = vweird.f32 %v862
    %vm912 = vweird.f32 %v906
    %vm913 = vmor %vm911, %vm912
    %v914 = vsel %vm913, %v906, %v910
    %v915 = vand.u32 2147483647, %v862
    %vm916 = vcmp.eq.f32.partialorder %v915, 8.507059e+37
    %v917 = vand.u32 %v862, 2147483648
    %v918 = vor.u32 1.1754944e-38, %v917
    %v919 = vsel %vm916, %v918, %v914
    %v920 = vmul.f32 %v798, %v919
    %v921 = vrcp.pop %v863
    %v922 = vmul.f32 %v863, %v921
    %v923 = vsub.f32 1.0, %v922
    %v924 = vmul.f32 %v921, %v923
    %v925 = vadd.f32 %v921, %v924
    %vm926 = vweird.f32 %v863
    %vm927 = vweird.f32 %v921
    %vm928 = vmor %vm926, %vm927
    %v929 = vsel %vm928, %v921, %v925
    %v930 = vand.u32 2147483647, %v863
    %vm931 = vcmp.eq.f32.partialorder %v930, 8.507059e+37
    %v932 = vand.u32 %v863, 2147483648
    %v933 = vor.u32 1.1754944e-38, %v932
    %v934 = vsel %vm931, %v933, %v929
    %v935 = vmul.f32 %v799, %v934
    %v936 = vrcp.pop %v864
    %v937 = vmul.f32 %v864, %v936
    %v938 = vsub.f32 1.0, %v937
    %v939 = vmul.f32 %v936, %v938
    %v940 = vadd.f32 %v936, %v939
    %vm941 = vweird.f32 %v864
    %vm942 = vweird.f32 %v936
    %vm943 = vmor %vm941, %vm942
    %v944 = vsel %vm943, %v936, %v940
    %v945 = vand.u32 2147483647, %v864
    %vm946 = vcmp.eq.f32.partialorder %v945, 8.507059e+37
    %v947 = vand.u32 %v864, 2147483648
    %v948 = vor.u32 1.1754944e-38, %v947
    %v949 = vsel %vm946, %v948, %v944
    %v950 = vmul.f32 %v800, %v949
    %v951 = vrcp.pop %v865
    %v952 = vmul.f32 %v865, %v951
    %v953 = vsub.f32 1.0, %v952
    %v954 = vmul.f32 %v951, %v953
    %v955 = vadd.f32 %v951, %v954
    %vm956 = vweird.f32 %v865
    %vm957 = vweird.f32 %v951
    %vm958 = vmor %vm956, %vm957
    %v959 = vsel %vm958, %v951, %v955
    %v960 = vand.u32 2147483647, %v865
    %vm961 = vcmp.eq.f32.partialorder %v960, 8.507059e+37
    %v962 = vand.u32 %v865, 2147483648
    %v963 = vor.u32 1.1754944e-38, %v962
    %v964 = vsel %vm961, %v963, %v959
    %v965 = vmul.f32 %v801, %v964
    %v966 = vrcp.pop %v866
    %v967 = vmul.f32 %v866, %v966
    %v968 = vsub.f32 1.0, %v967
    %v969 = vmul.f32 %v966, %v968
    %v970 = vadd.f32 %v966, %v969
    %vm971 = vweird.f32 %v866
    %vm972 = vweird.f32 %v966
    %vm973 = vmor %vm971, %vm972
    %v974 = vsel %vm973, %v966, %v970
    %v975 = vand.u32 2147483647, %v866
    %vm976 = vcmp.eq.f32.partialorder %v975, 8.507059e+37
    %v977 = vand.u32 %v866, 2147483648
    %v978 = vor.u32 1.1754944e-38, %v977
    %v979 = vsel %vm976, %v978, %v974
    %v980 = vmul.f32 %v802, %v979
    %v981 = vrcp.pop %v867
    %v982 = vmul.f32 %v867, %v981
    %v983 = vsub.f32 1.0, %v982
    %v984 = vmul.f32 %v981, %v983
    %v985 = vadd.f32 %v981, %v984
    %vm986 = vweird.f32 %v867
    %vm987 = vweird.f32 %v981
    %vm988 = vmor %vm986, %vm987
    %v989 = vsel %vm988, %v981, %v985
    %v990 = vand.u32 2147483647, %v867
    %vm991 = vcmp.eq.f32.partialorder %v990, 8.507059e+37
    %v992 = vand.u32 %v867, 2147483648
    %v993 = vor.u32 1.1754944e-38, %v992
    %v994 = vsel %vm991, %v993, %v989
    %v995 = vmul.f32 %v803, %v994
    %v996 = vrcp.pop %v868
    %v997 = vmul.f32 %v868, %v996
    %v998 = vsub.f32 1.0, %v997
    %v999 = vmul.f32 %v996, %v998
    %v1000 = vadd.f32 %v996, %v999
    %vm1001 = vweird.f32 %v868
    %vm1002 = vweird.f32 %v996
    %vm1003 = vmor %vm1001, %vm1002
    %v1004 = vsel %vm1003, %v996, %v1000
    %v1005 = vand.u32 2147483647, %v868
    %vm1006 = vcmp.eq.f32.partialorder %v1005, 8.507059e+37
    %v1007 = vand.u32 %v868, 2147483648
    %v1008 = vor.u32 1.1754944e-38, %v1007
    %v1009 = vsel %vm1006, %v1008, %v1004
    %v1010 = vmul.f32 %v804, %v1009
    %v1011 = vrcp.pop %v869
    %v1012 = vmul.f32 %v869, %v1011
    %v1013 = vsub.f32 1.0, %v1012
    %v1014 = vmul.f32 %v1011, %v1013
    %v1015 = vadd.f32 %v1011, %v1014
    %vm1016 = vweird.f32 %v869
    %vm1017 = vweird.f32 %v1011
    %vm1018 = vmor %vm1016, %vm1017
    %v1019 = vsel %vm1018, %v1011, %v1015
    %v1020 = vand.u32 2147483647, %v869
    %vm1021 = vcmp.eq.f32.partialorder %v1020, 8.507059e+37
    %v1022 = vand.u32 %v869, 2147483648
    %v1023 = vor.u32 1.1754944e-38, %v1022
    %v1024 = vsel %vm1021, %v1023, %v1019
    %v1025 = vmul.f32 %v805, %v1024
    %v1026 = vrcp.pop %v870
    %v1027 = vmul.f32 %v870, %v1026
    %v1028 = vsub.f32 1.0, %v1027
    %v1029 = vmul.f32 %v1026, %v1028
    %v1030 = vadd.f32 %v1026, %v1029
    %vm1031 = vweird.f32 %v870
    %vm1032 = vweird.f32 %v1026
    %vm1033 = vmor %vm1031, %vm1032
    %v1034 = vsel %vm1033, %v1026, %v1030
    %v1035 = vand.u32 2147483647, %v870
    %vm1036 = vcmp.eq.f32.partialorder %v1035, 8.507059e+37
    %v1037 = vand.u32 %v870, 2147483648
    %v1038 = vor.u32 1.1754944e-38, %v1037
    %v1039 = vsel %vm1036, %v1038, %v1034
    %v1040 = vmul.f32 %v806, %v1039
    %v1041 = vrcp.pop %v871
    %v1042 = vmul.f32 %v871, %v1041
    %v1043 = vsub.f32 1.0, %v1042
    %v1044 = vmul.f32 %v1041, %v1043
    %v1045 = vadd.f32 %v1041, %v1044
    %vm1046 = vweird.f32 %v871
    %vm1047 = vweird.f32 %v1041
    %vm1048 = vmor %vm1046, %vm1047
    %v1049 = vsel %vm1048, %v1041, %v1045
    %v1050 = vand.u32 2147483647, %v871
    %vm1051 = vcmp.eq.f32.partialorder %v1050, 8.507059e+37
    %v1052 = vand.u32 %v871, 2147483648
    %v1053 = vor.u32 1.1754944e-38, %v1052
    %v1054 = vsel %vm1051, %v1053, %v1049
    %v1055 = vmul.f32 %v807, %v1054
    %v1056 = vrcp.pop %v872
    %v1057 = vmul.f32 %v872, %v1056
    %v1058 = vsub.f32 1.0, %v1057
    %v1059 = vmul.f32 %v1056, %v1058
    %v1060 = vadd.f32 %v1056, %v1059
    %vm1061 = vweird.f32 %v872
    %vm1062 = vweird.f32 %v1056
    %vm1063 = vmor %vm1061, %vm1062
    %v1064 = vsel %vm1063, %v1056, %v1060
    %v1065 = vand.u32 2147483647, %v872
    %vm1066 = vcmp.eq.f32.partialorder %v1065, 8.507059e+37
    %v1067 = vand.u32 %v872, 2147483648
    %v1068 = vor.u32 1.1754944e-38, %v1067
    %v1069 = vsel %vm1066, %v1068, %v1064
    %v1070 = vmul.f32 %v808, %v1069
    %v1071 = vrcp.pop %v873
    %v1072 = vmul.f32 %v873, %v1071
    %v1073 = vsub.f32 1.0, %v1072
    %v1074 = vmul.f32 %v1071, %v1073
    %v1075 = vadd.f32 %v1071, %v1074
    %vm1076 = vweird.f32 %v873
    %vm1077 = vweird.f32 %v1071
    %vm1078 = vmor %vm1076, %vm1077
    %v1079 = vsel %vm1078, %v1071, %v1075
    %v1080 = vand.u32 2147483647, %v873
    %vm1081 = vcmp.eq.f32.partialorder %v1080, 8.507059e+37
    %v1082 = vand.u32 %v873, 2147483648
    %v1083 = vor.u32 1.1754944e-38, %v1082
    %v1084 = vsel %vm1081, %v1083, %v1079
    %v1085 = vmul.f32 %v809, %v1084
    %v1086 = vrcp.pop %v874
    %v1087 = vmul.f32 %v874, %v1086
    %v1088 = vsub.f32 1.0, %v1087
    %v1089 = vmul.f32 %v1086, %v1088
    %v1090 = vadd.f32 %v1086, %v1089
    %vm1091 = vweird.f32 %v874
    %vm1092 = vweird.f32 %v1086
    %vm1093 = vmor %vm1091, %vm1092
    %v1094 = vsel %vm1093, %v1086, %v1090
    %v1095 = vand.u32 2147483647, %v874
    %vm1096 = vcmp.eq.f32.partialorder %v1095, 8.507059e+37
    %v1097 = vand.u32 %v874, 2147483648
    %v1098 = vor.u32 1.1754944e-38, %v1097
    %v1099 = vsel %vm1096, %v1098, %v1094
    %v1100 = vmul.f32 %v810, %v1099
    %v1101 = vrcp.pop %v875
    %v1102 = vmul.f32 %v875, %v1101
    %v1103 = vsub.f32 1.0, %v1102
    %v1104 = vmul.f32 %v1101, %v1103
    %v1105 = vadd.f32 %v1101, %v1104
    %vm1106 = vweird.f32 %v875
    %vm1107 = vweird.f32 %v1101
    %vm1108 = vmor %vm1106, %vm1107
    %v1109 = vsel %vm1108, %v1101, %v1105
    %v1110 = vand.u32 2147483647, %v875
    %vm1111 = vcmp.eq.f32.partialorder %v1110, 8.507059e+37
    %v1112 = vand.u32 %v875, 2147483648
    %v1113 = vor.u32 1.1754944e-38, %v1112
    %v1114 = vsel %vm1111, %v1113, %v1109
    %v1115 = vmul.f32 %v811, %v1114
    %vm1116 = vcmask 64512
    %v1118 = vsel %vm1116, %v890, 0
    %1120 = vmatpush.msra.mxu0 0.0
    %1121 = vmatpush.msra.mxu0 0.0
    %1122 = vmatpush.msra.mxu0 0.0
    %1123 = vmatpush.msra.mxu0 0.0
    %1124 = vmatpush.msra.mxu0 0.0
    %1125 = vmatpush.msra.mxu0 0.0
    %1126 = vmatpush.msra.mxu0 0.0
    %1127 = vmatpush.msra.mxu0 0.0
    %1128 = vmatpush.msra.mxu0 0.0
    %1129 = vmatpush.msra.mxu0 0.0
    %1130 = vmatpush.msra.mxu0 0.0
    %1131 = vmatpush.msra.mxu0 0.0
    %1132 = vmatpush.msra.mxu0 0.0
    %1133 = vmatpush.msra.mxu0 0.0
    %1134 = vmatpush.msra.mxu0 0.0
    %1135 = vmatpush.msra.mxu0 %v68
    %1136 = vmatmul.f32.gmra.mxu0 %v1118
    %v1137 = vpop.f32.mrf.mxu0
    %v1138 = vadd.f32 0.0, %v1137
    %1139 = vdwg.mxu0
    %v1141 = vsel %vm1116, %v905, 0
    %1143 = vmatpush.msra.mxu0 0.0
    %1144 = vmatpush.msra.mxu0 0.0
    %1145 = vmatpush.msra.mxu0 0.0
    %1146 = vmatpush.msra.mxu0 0.0
    %1147 = vmatpush.msra.mxu0 0.0
    %1148 = vmatpush.msra.mxu0 0.0
    %1149 = vmatpush.msra.mxu0 0.0
    %1150 = vmatpush.msra.mxu0 0.0
    %1151 = vmatpush.msra.mxu0 0.0
    %1152 = vmatpush.msra.mxu0 0.0
    %1153 = vmatpush.msra.mxu0 0.0
    %1154 = vmatpush.msra.mxu0 0.0
    %1155 = vmatpush.msra.mxu0 0.0
    %1156 = vmatpush.msra.mxu0 0.0
    %1157 = vmatpush.msra.mxu0 0.0
    %1158 = vmatpush.msra.mxu0 %v69
    %1159 = vmatmul.f32.gmra.mxu0 %v1141
    %v1160 = vpop.f32.mrf.mxu0
    %v1161 = vadd.f32 0.0, %v1160
    %1162 = vdwg.mxu0
    %v1164 = vsel %vm1116, %v920, 0
    %1166 = vmatpush.msra.mxu0 0.0
    %1167 = vmatpush.msra.mxu0 0.0
    %1168 = vmatpush.msra.mxu0 0.0
    %1169 = vmatpush.msra.mxu0 0.0
    %1170 = vmatpush.msra.mxu0 0.0
    %1171 = vmatpush.msra.mxu0 0.0
    %1172 = vmatpush.msra.mxu0 0.0
    %1173 = vmatpush.msra.mxu0 0.0
    %1174 = vmatpush.msra.mxu0 0.0
    %1175 = vmatpush.msra.mxu0 0.0
    %1176 = vmatpush.msra.mxu0 0.0
    %1177 = vmatpush.msra.mxu0 0.0
    %1178 = vmatpush.msra.mxu0 0.0
    %1179 = vmatpush.msra.mxu0 0.0
    %1180 = vmatpush.msra.mxu0 0.0
    %1181 = vmatpush.msra.mxu0 %v70
    %1182 = vmatmul.f32.gmra.mxu0 %v1164
    %v1183 = vpop.f32.mrf.mxu0
    %v1184 = vadd.f32 0.0, %v1183
    %1185 = vdwg.mxu0
    %v1187 = vsel %vm1116, %v935, 0
    %1189 = vmatpush.msra.mxu0 0.0
    %1190 = vmatpush.msra.mxu0 0.0
    %1191 = vmatpush.msra.mxu0 0.0
    %1192 = vmatpush.msra.mxu0 0.0
    %1193 = vmatpush.msra.mxu0 0.0
    %1194 = vmatpush.msra.mxu0 0.0
    %1195 = vmatpush.msra.mxu0 0.0
    %1196 = vmatpush.msra.mxu0 0.0
    %1197 = vmatpush.msra.mxu0 0.0
    %1198 = vmatpush.msra.mxu0 0.0
    %1199 = vmatpush.msra.mxu0 0.0
    %1200 = vmatpush.msra.mxu0 0.0
    %1201 = vmatpush.msra.mxu0 0.0
    %1202 = vmatpush.msra.mxu0 0.0
    %1203 = vmatpush.msra.mxu0 0.0
    %1204 = vmatpush.msra.mxu0 %v71
    %1205 = vmatmul.f32.gmra.mxu0 %v1187
    %v1206 = vpop.f32.mrf.mxu0
    %v1207 = vadd.f32 0.0, %v1206
    %1208 = vdwg.mxu0
    %v1210 = vsel %vm1116, %v950, 0
    %1212 = vmatpush.msra.mxu0 0.0
    %1213 = vmatpush.msra.mxu0 0.0
    %1214 = vmatpush.msra.mxu0 0.0
    %1215 = vmatpush.msra.mxu0 0.0
    %1216 = vmatpush.msra.mxu0 0.0
    %1217 = vmatpush.msra.mxu0 0.0
    %1218 = vmatpush.msra.mxu0 0.0
    %1219 = vmatpush.msra.mxu0 0.0
    %1220 = vmatpush.msra.mxu0 0.0
    %1221 = vmatpush.msra.mxu0 0.0
    %1222 = vmatpush.msra.mxu0 0.0
    %1223 = vmatpush.msra.mxu0 0.0
    %1224 = vmatpush.msra.mxu0 0.0
    %1225 = vmatpush.msra.mxu0 0.0
    %1226 = vmatpush.msra.mxu0 0.0
    %1227 = vmatpush.msra.mxu0 %v72
    %1228 = vmatmul.f32.gmra.mxu0 %v1210
    %v1229 = vpop.f32.mrf.mxu0
    %v1230 = vadd.f32 0.0, %v1229
    %1231 = vdwg.mxu0
    %v1233 = vsel %vm1116, %v965, 0
    %1235 = vmatpush.msra.mxu0 0.0
    %1236 = vmatpush.msra.mxu0 0.0
    %1237 = vmatpush.msra.mxu0 0.0
    %1238 = vmatpush.msra.mxu0 0.0
    %1239 = vmatpush.msra.mxu0 0.0
    %1240 = vmatpush.msra.mxu0 0.0
    %1241 = vmatpush.msra.mxu0 0.0
    %1242 = vmatpush.msra.mxu0 0.0
    %1243 = vmatpush.msra.mxu0 0.0
    %1244 = vmatpush.msra.mxu0 0.0
    %1245 = vmatpush.msra.mxu0 0.0
    %1246 = vmatpush.msra.mxu0 0.0
    %1247 = vmatpush.msra.mxu0 0.0
    %1248 = vmatpush.msra.mxu0 0.0
    %1249 = vmatpush.msra.mxu0 0.0
    %1250 = vmatpush.msra.mxu0 %v73
    %1251 = vmatmul.f32.gmra.mxu0 %v1233
    %v1252 = vpop.f32.mrf.mxu0
    %v1253 = vadd.f32 0.0, %v1252
    %1254 = vdwg.mxu0
    %v1256 = vsel %vm1116, %v980, 0
    %1258 = vmatpush.msra.mxu0 0.0
    %1259 = vmatpush.msra.mxu0 0.0
    %1260 = vmatpush.msra.mxu0 0.0
    %1261 = vmatpush.msra.mxu0 0.0
    %1262 = vmatpush.msra.mxu0 0.0
    %1263 = vmatpush.msra.mxu0 0.0
    %1264 = vmatpush.msra.mxu0 0.0
    %1265 = vmatpush.msra.mxu0 0.0
    %1266 = vmatpush.msra.mxu0 0.0
    %1267 = vmatpush.msra.mxu0 0.0
    %1268 = vmatpush.msra.mxu0 0.0
    %1269 = vmatpush.msra.mxu0 0.0
    %1270 = vmatpush.msra.mxu0 0.0
    %1271 = vmatpush.msra.mxu0 0.0
    %1272 = vmatpush.msra.mxu0 0.0
    %1273 = vmatpush.msra.mxu0 %v74
    %1274 = vmatmul.f32.gmra.mxu0 %v1256
    %v1275 = vpop.f32.mrf.mxu0
    %v1276 = vadd.f32 0.0, %v1275
    %1277 = vdwg.mxu0
    %v1279 = vsel %vm1116, %v995, 0
    %1281 = vmatpush.msra.mxu0 0.0
    %1282 = vmatpush.msra.mxu0 0.0
    %1283 = vmatpush.msra.mxu0 0.0
    %1284 = vmatpush.msra.mxu0 0.0
    %1285 = vmatpush.msra.mxu0 0.0
    %1286 = vmatpush.msra.mxu0 0.0
    %1287 = vmatpush.msra.mxu0 0.0
    %1288 = vmatpush.msra.mxu0 0.0
    %1289 = vmatpush.msra.mxu0 0.0
    %1290 = vmatpush.msra.mxu0 0.0
    %1291 = vmatpush.msra.mxu0 0.0
    %1292 = vmatpush.msra.mxu0 0.0
    %1293 = vmatpush.msra.mxu0 0.0
    %1294 = vmatpush.msra.mxu0 0.0
    %1295 = vmatpush.msra.mxu0 0.0
    %1296 = vmatpush.msra.mxu0 %v75
    %1297 = vmatmul.f32.gmra.mxu0 %v1279
    %v1298 = vpop.f32.mrf.mxu0
    %v1299 = vadd.f32 0.0, %v1298
    %1300 = vdwg.mxu0
    %v1302 = vsel %vm1116, %v1010, 0
    %1304 = vmatpush.msra.mxu0 0.0
    %1305 = vmatpush.msra.mxu0 0.0
    %1306 = vmatpush.msra.mxu0 0.0
    %1307 = vmatpush.msra.mxu0 0.0
    %1308 = vmatpush.msra.mxu0 0.0
    %1309 = vmatpush.msra.mxu0 0.0
    %1310 = vmatpush.msra.mxu0 0.0
    %1311 = vmatpush.msra.mxu0 0.0
    %1312 = vmatpush.msra.mxu0 0.0
    %1313 = vmatpush.msra.mxu0 0.0
    %1314 = vmatpush.msra.mxu0 0.0
    %1315 = vmatpush.msra.mxu0 0.0
    %1316 = vmatpush.msra.mxu0 0.0
    %1317 = vmatpush.msra.mxu0 0.0
    %1318 = vmatpush.msra.mxu0 0.0
    %1319 = vmatpush.msra.mxu0 %v76
    %1320 = vmatmul.f32.gmra.mxu0 %v1302
    %v1321 = vpop.f32.mrf.mxu0
    %v1322 = vadd.f32 0.0, %v1321
    %1323 = vdwg.mxu0
    %v1325 = vsel %vm1116, %v1025, 0
    %1327 = vmatpush.msra.mxu0 0.0
    %1328 = vmatpush.msra.mxu0 0.0
    %1329 = vmatpush.msra.mxu0 0.0
    %1330 = vmatpush.msra.mxu0 0.0
    %1331 = vmatpush.msra.mxu0 0.0
    %1332 = vmatpush.msra.mxu0 0.0
    %1333 = vmatpush.msra.mxu0 0.0
    %1334 = vmatpush.msra.mxu0 0.0
    %1335 = vmatpush.msra.mxu0 0.0
    %1336 = vmatpush.msra.mxu0 0.0
    %1337 = vmatpush.msra.mxu0 0.0
    %1338 = vmatpush.msra.mxu0 0.0
    %1339 = vmatpush.msra.mxu0 0.0
    %1340 = vmatpush.msra.mxu0 0.0
    %1341 = vmatpush.msra.mxu0 0.0
    %1342 = vmatpush.msra.mxu0 %v77
    %1343 = vmatmul.f32.gmra.mxu0 %v1325
    %v1344 = vpop.f32.mrf.mxu0
    %v1345 = vadd.f32 0.0, %v1344
    %1346 = vdwg.mxu0
    %v1348 = vsel %vm1116, %v1040, 0
    %1350 = vmatpush.msra.mxu0 0.0
    %1351 = vmatpush.msra.mxu0 0.0
    %1352 = vmatpush.msra.mxu0 0.0
    %1353 = vmatpush.msra.mxu0 0.0
    %1354 = vmatpush.msra.mxu0 0.0
    %1355 = vmatpush.msra.mxu0 0.0
    %1356 = vmatpush.msra.mxu0 0.0
    %1357 = vmatpush.msra.mxu0 0.0
    %1358 = vmatpush.msra.mxu0 0.0
    %1359 = vmatpush.msra.mxu0 0.0
    %1360 = vmatpush.msra.mxu0 0.0
    %1361 = vmatpush.msra.mxu0 0.0
    %1362 = vmatpush.msra.mxu0 0.0
    %1363 = vmatpush.msra.mxu0 0.0
    %1364 = vmatpush.msra.mxu0 0.0
    %1365 = vmatpush.msra.mxu0 %v78
    %1366 = vmatmul.f32.gmra.mxu0 %v1348
    %v1367 = vpop.f32.mrf.mxu0
    %v1368 = vadd.f32 0.0, %v1367
    %1369 = vdwg.mxu0
    %v1371 = vsel %vm1116, %v1055, 0
    %1373 = vmatpush.msra.mxu0 0.0
    %1374 = vmatpush.msra.mxu0 0.0
    %1375 = vmatpush.msra.mxu0 0.0
    %1376 = vmatpush.msra.mxu0 0.0
    %1377 = vmatpush.msra.mxu0 0.0
    %1378 = vmatpush.msra.mxu0 0.0
    %1379 = vmatpush.msra.mxu0 0.0
    %1380 = vmatpush.msra.mxu0 0.0
    %1381 = vmatpush.msra.mxu0 0.0
    %1382 = vmatpush.msra.mxu0 0.0
    %1383 = vmatpush.msra.mxu0 0.0
    %1384 = vmatpush.msra.mxu0 0.0
    %1385 = vmatpush.msra.mxu0 0.0
    %1386 = vmatpush.msra.mxu0 0.0
    %1387 = vmatpush.msra.mxu0 0.0
    %1388 = vmatpush.msra.mxu0 %v79
    %1389 = vmatmul.f32.gmra.mxu0 %v1371
    %v1390 = vpop.f32.mrf.mxu0
    %v1391 = vadd.f32 0.0, %v1390
    %1392 = vdwg.mxu0
    %v1394 = vsel %vm1116, %v1070, 0
    %1396 = vmatpush.msra.mxu0 0.0
    %1397 = vmatpush.msra.mxu0 0.0
    %1398 = vmatpush.msra.mxu0 0.0
    %1399 = vmatpush.msra.mxu0 0.0
    %1400 = vmatpush.msra.mxu0 0.0
    %1401 = vmatpush.msra.mxu0 0.0
    %1402 = vmatpush.msra.mxu0 0.0
    %1403 = vmatpush.msra.mxu0 0.0
    %1404 = vmatpush.msra.mxu0 0.0
    %1405 = vmatpush.msra.mxu0 0.0
    %1406 = vmatpush.msra.mxu0 0.0
    %1407 = vmatpush.msra.mxu0 0.0
    %1408 = vmatpush.msra.mxu0 0.0
    %1409 = vmatpush.msra.mxu0 0.0
    %1410 = vmatpush.msra.mxu0 0.0
    %1411 = vmatpush.msra.mxu0 %v80
    %1412 = vmatmul.f32.gmra.mxu0 %v1394
    %v1413 = vpop.f32.mrf.mxu0
    %v1414 = vadd.f32 0.0, %v1413
    %1415 = vdwg.mxu0
    %v1417 = vsel %vm1116, %v1085, 0
    %1419 = vmatpush.msra.mxu0 0.0
    %1420 = vmatpush.msra.mxu0 0.0
    %1421 = vmatpush.msra.mxu0 0.0
    %1422 = vmatpush.msra.mxu0 0.0
    %1423 = vmatpush.msra.mxu0 0.0
    %1424 = vmatpush.msra.mxu0 0.0
    %1425 = vmatpush.msra.mxu0 0.0
    %1426 = vmatpush.msra.mxu0 0.0
    %1427 = vmatpush.msra.mxu0 0.0
    %1428 = vmatpush.msra.mxu0 0.0
    %1429 = vmatpush.msra.mxu0 0.0
    %1430 = vmatpush.msra.mxu0 0.0
    %1431 = vmatpush.msra.mxu0 0.0
    %1432 = vmatpush.msra.mxu0 0.0
    %1433 = vmatpush.msra.mxu0 0.0
    %1434 = vmatpush.msra.mxu0 %v81
    %1435 = vmatmul.f32.gmra.mxu0 %v1417
    %v1436 = vpop.f32.mrf.mxu0
    %v1437 = vadd.f32 0.0, %v1436
    %1438 = vdwg.mxu0
    %v1440 = vsel %vm1116, %v1100, 0
    %1442 = vmatpush.msra.mxu0 0.0
    %1443 = vmatpush.msra.mxu0 0.0
    %1444 = vmatpush.msra.mxu0 0.0
    %1445 = vmatpush.msra.mxu0 0.0
    %1446 = vmatpush.msra.mxu0 0.0
    %1447 = vmatpush.msra.mxu0 0.0
    %1448 = vmatpush.msra.mxu0 0.0
    %1449 = vmatpush.msra.mxu0 0.0
    %1450 = vmatpush.msra.mxu0 0.0
    %1451 = vmatpush.msra.mxu0 0.0
    %1452 = vmatpush.msra.mxu0 0.0
    %1453 = vmatpush.msra.mxu0 0.0
    %1454 = vmatpush.msra.mxu0 0.0
    %1455 = vmatpush.msra.mxu0 0.0
    %1456 = vmatpush.msra.mxu0 0.0
    %1457 = vmatpush.msra.mxu0 %v82
    %1458 = vmatmul.f32.gmra.mxu0 %v1440
    %v1459 = vpop.f32.mrf.mxu0
    %v1460 = vadd.f32 0.0, %v1459
    %1461 = vdwg.mxu0
    %v1463 = vsel %vm1116, %v1115, 0
    %1465 = vmatpush.msra.mxu0 0.0
    %1466 = vmatpush.msra.mxu0 0.0
    %1467 = vmatpush.msra.mxu0 0.0
    %1468 = vmatpush.msra.mxu0 0.0
    %1469 = vmatpush.msra.mxu0 0.0
    %1470 = vmatpush.msra.mxu0 0.0
    %1471 = vmatpush.msra.mxu0 0.0
    %1472 = vmatpush.msra.mxu0 0.0
    %1473 = vmatpush.msra.mxu0 0.0
    %1474 = vmatpush.msra.mxu0 0.0
    %1475 = vmatpush.msra.mxu0 0.0
    %1476 = vmatpush.msra.mxu0 0.0
    %1477 = vmatpush.msra.mxu0 0.0
    %1478 = vmatpush.msra.mxu0 0.0
    %1479 = vmatpush.msra.mxu0 0.0
    %1480 = vmatpush.msra.mxu0 %v83
    %1481 = vmatmul.f32.gmra.mxu0 %v1463
    %v1482 = vpop.f32.mrf.mxu0
    %v1483 = vadd.f32 0.0, %v1482
    %1484 = vdwg.mxu0
    %v1501 = vrot.slane %v1161, 7
    %vm1502 = vcmask 1041409
    %v1503 = vsel %vm1502, %v1501, %v1138
    %v1504 = vrot.slane %v1184, 6
    %vm1505 = vcmask 1042434
    %v1506 = vsel %vm1505, %v1504, %v1503
    %v1507 = vrot.slane %v1207, 5
    %vm1508 = vcmask 1043459
    %v1509 = vsel %vm1508, %v1507, %v1506
    %v1510 = vrot.slane %v1230, 4
    %vm1511 = vcmask 1044484
    %v1512 = vsel %vm1511, %v1510, %v1509
    %v1513 = vrot.slane %v1253, 3
    %vm1514 = vcmask 1045509
    %v1515 = vsel %vm1514, %v1513, %v1512
    %v1516 = vrot.slane %v1276, 2
    %vm1517 = vcmask 1046534
    %v1518 = vsel %vm1517, %v1516, %v1515
    %v1519 = vrot.slane %v1299, 1
    %vm1520 = vcmask 1047559
    %v1521 = vsel %vm1520, %v1519, %v1518
    %v1522 = vrot.slane %v1345, 7
    %v1523 = vsel %vm1502, %v1522, %v1322
    %v1524 = vrot.slane %v1368, 6
    %v1525 = vsel %vm1505, %v1524, %v1523
    %v1526 = vrot.slane %v1391, 5
    %v1527 = vsel %vm1508, %v1526, %v1525
    %v1528 = vrot.slane %v1414, 4
    %v1529 = vsel %vm1511, %v1528, %v1527
    %v1530 = vrot.slane %v1437, 3
    %v1531 = vsel %vm1514, %v1530, %v1529
    %v1532 = vrot.slane %v1460, 2
    %v1533 = vsel %vm1517, %v1532, %v1531
    %v1534 = vrot.slane %v1483, 1
    %v1535 = vsel %vm1520, %v1534, %v1533
    %1538 = vst [vmem:[#allocation7] sm:$0xff] %v1521
    %1539 = vst [vmem:[#allocation7 + $0x8] sm:$0xff] %v1535
    // Predicated region
    $region26: #{tpu_custom_call.1} parent=1 // pred_check
      _
    $region27: #{tpu_custom_call.1} parent=1 // pred_check_branch
      %1541 = sbr.rel (0) target = $region29
    $region28: #{tpu_custom_call.1} parent=1 // pred_region
      %1543 = vsyncadd [#allocation4], 0
      %s1544 = sshll.u32 [#allocation7], 4
      %s1545 = int_to_ptr.vmem [resolvable:$true] %s1544
      %s1546 = sshll.u32 %s4, 4
      %s1547 = int_to_ptr.hbm [resolvable:$true] %s1546
      %1552 = dma.vmem_to_hbm [thread:$0]  %s1545, 256, %s1547, [#allocation4], 128, 128, 8
    $region29: #{tpu_custom_call.1} parent=1 // pred_fallthru
      _
    // Predicated region
    $region30: #{tpu_custom_call.1} parent=1 // pred_check
      _
    $region31: #{tpu_custom_call.1} parent=1 // pred_check_branch
      %1554 = sbr.rel (0) target = $region33
    $region32: #{tpu_custom_call.1} parent=1 // pred_region
      %1556 = dma.done [#allocation4], 256
    $region33: #{tpu_custom_call.1} parent=1 // pred_fallthru
      _
    %1557 = vsyncpa [#allocation3], 1
    %1558 = vsyncpa [#allocation6], 1
    %1559 = vsyncpa [#allocation4], 1

</llo_original>
